<compile_context>
chip_gen: v7x
topology: tpu7x:2x2x1
jax: 0.10.0
libtpu: 0.0.40
codegen_flags: <defaults>
</compile_context>

<pallas_src>
import jax
import jax.numpy as jnp
from jax import lax
from jax.experimental import pallas as pl
from jax.experimental.pallas import tpu as pltpu

NEG_SLOPE = 0.6197335

# conv hyper-params (fixed by the module)
C_IN, C_OUT = 6, 1
KH, KW = 5, 5
SH, SW = 3, 5
PH, PW = 4, 1
K_TOTAL = C_IN * KH * KW          # 150 reduction terms


def _make_kernel(k_total, n_acc=4):
    """Direct conv (as a K-term FMA reduction) + leaky-relu on one batch tile."""

    def kernel(x_ref, w_ref, b_ref, o_ref):
        # x_ref: (1, K, Ho, M)  VMEM  -- M = B*Wo lanes, contiguous slabs per k
        # w_ref: (K,)           SMEM  -- PyTorch-order flattened weight (c*25+kh*5+kw)
        # b_ref: (1,)           SMEM  -- bias
        # o_ref: (1, Ho, M)     VMEM  -- lane-dense output block
        accs = [None] * n_acc
        for k in range(k_total):
            term = w_ref[k] * x_ref[0, k]          # scalar splat * (Ho, M) slab
            a = k % n_acc
            accs[a] = term if accs[a] is None else accs[a] + term
        acc = accs[0]
        for a in range(1, n_acc):
            if accs[a] is not None:
                acc = acc + accs[a]
        acc = acc + b_ref[0]
        o_ref[0] = jnp.where(acc > 0, acc, acc * NEG_SLOPE)

    return kernel


def conv_leakyrelu(x, weight, bias):
    """x: (N, C, H, W) f32; weight: (C_OUT, C_IN, KH, KW); bias: (C_OUT,)."""
    n, c, h, w = x.shape
    assert c == C_IN
    # The W-reshape trick below relies on the stride tiling the kernel exactly.
    assert SW == KW, "W-window reshape requires stride_w == kernel_w"

    h_out = (h + 2 * PH - KH) // SH + 1
    w_out = (w + 2 * PW - KW) // SW + 1
    hp = h + 2 * PH

    # ---- batch tiling: pack B images into the lane axis -------------------
    per_img_block_bytes = K_TOTAL * h_out * w_out * 4
    b_for_lanes = pl.cdiv(128, w_out)                       # aim for >=128 lanes
    b_for_vmem = max(1, (4 * 1024 * 1024) // per_img_block_bytes)
    b_tile = max(1, min(n, b_for_lanes, b_for_vmem))
    nb = pl.cdiv(n, b_tile)
    n_pad = nb * b_tile
    m_lanes = b_tile * w_out

    # ---- host prep: pad + im2col into a lane-dense (NB, K, Ho, B*Wo) slab --
    xf = x.astype(jnp.float32)
    if n_pad != n:
        xf = jnp.pad(xf, ((0, n_pad - n), (0, 0), (0, 0), (0, 0)))
    xp = jnp.pad(xf, ((0, 0), (0, 0), (PH, PH), (PW, PW)))          # (Np,C,Hp,Wp)
    # SW == KW: the W windows tile the padded width exactly -> pure reshape.
    xr = xp[:, :, :, : w_out * KW].reshape(n_pad, C_IN, hp, w_out, KW)
    # Host H-gather (replaces the in-kernel strided reads).
    h_idx = SH * jnp.arange(h_out)[:, None] + jnp.arange(KH)[None, :]  # (Ho,KH)
    xg = xr[:, :, h_idx]                       # (Np, C, Ho, KH, Wo, KW)
    xg = xg.reshape(nb, b_tile, C_IN, h_out, KH, w_out, KW)
    # -> (NB, C, KH, KW, Ho, B, Wo) -> (NB, K, Ho, B*Wo)
    xt = xg.transpose(0, 2, 4, 6, 3, 1, 5).reshape(nb, K_TOTAL, h_out, m_lanes)

    w_flat = weight.reshape(K_TOTAL).astype(jnp.float32)    # c*25 + kh*5 + kw
    b_vec = bias.reshape(C_OUT).astype(jnp.float32)

    in_block_bytes = K_TOTAL * h_out * m_lanes * 4
    out_block_bytes = h_out * m_lanes * 4
    vmem_bytes = min(128 * 1024 * 1024,
                     max(4 * 1024 * 1024, 3 * (in_block_bytes + out_block_bytes)))

    kernel = _make_kernel(K_TOTAL)

    out_packed = pl.pallas_call(
        kernel,
        out_shape=jax.ShapeDtypeStruct((nb, h_out, m_lanes), jnp.float32),
        grid_spec=pltpu.PrefetchScalarGridSpec(
            num_scalar_prefetch=0,
            grid=(nb,),
            in_specs=[
                pl.BlockSpec((1, K_TOTAL, h_out, m_lanes),
                             lambda i: (i, 0, 0, 0)),
                pl.BlockSpec(memory_space=pltpu.MemorySpace.SMEM),   # weights
                pl.BlockSpec(memory_space=pltpu.MemorySpace.SMEM),   # bias
            ],
            out_specs=pl.BlockSpec((1, h_out, m_lanes), lambda i: (i, 0, 0)),
        ),
        compiler_params=pltpu.CompilerParams(
            dimension_semantics=("parallel",),
            vmem_limit_bytes=vmem_bytes,
        ),
    )(xt, w_flat, b_vec)

    # (NB, Ho, B*Wo) -> (N, 1, Ho, Wo)
    out = (out_packed.reshape(nb, h_out, b_tile, w_out)
           .transpose(0, 2, 1, 3)
           .reshape(n_pad, h_out, w_out)[:n])
    return out[:, None, :, :]


def _reference(x, weight, bias):
    v1 = lax.conv_general_dilated(
        x, weight, window_strides=(SH, SW), padding=((PH, PH), (PW, PW)),
        dimension_numbers=("NCHW", "OIHW", "NCHW"))
    v1 = v1 + bias.reshape(1, C_OUT, 1, 1)
    return jnp.where(v1 > 0, v1, v1 * NEG_SLOPE)


if __name__ == "__main__":
    key = jax.random.PRNGKey(0)
    kx, kw_, kb = jax.random.split(key, 3)

    # input: batch=2, channels=6 (required by the conv), spatial=16x16
    x = jax.random.normal(kx, (2, C_IN, 16, 16), dtype=jnp.float32)

    # deterministic param init (PyTorch-style uniform(-1/sqrt(fan_in), +))
    fan_in = C_IN * KH * KW
    bound = 1.0 / (fan_in ** 0.5)
    weight = jax.random.uniform(kw_, (C_OUT, C_IN, KH, KW),
                                minval=-bound, maxval=bound, dtype=jnp.float32)
    bias = jax.random.uniform(kb, (C_OUT,), minval=-bound, maxval=bound,
                              dtype=jnp.float32)

    out = jax.block_until_ready(conv_leakyrelu(x, weight, bias))
    ref = jax.block_until_ready(_reference(x, weight, bias))

    assert out.shape == ref.shape, (out.shape, ref.shape)
    assert jnp.allclose(out, ref, rtol=1e-4, atol=1e-5), float(
        jnp.max(jnp.abs(out - ref)))

    print("KERNEL_OK")
</pallas_src>

<mosaic_0001>
module attributes {stable_mosaic.version = 11 : i64} {
  func.func @kernel(%arg0: i32, %arg1: memref<1x150x7x6xf32, #tpu.memory_space<vmem>>, %arg2: memref<150xf32, #tpu.memory_space<smem>>, %arg3: memref<1xf32, #tpu.memory_space<smem>>, %arg4: memref<1x7x6xf32, #tpu.memory_space<vmem>>) attributes {dimension_semantics = [#tpu.dimension_semantics<parallel>], iteration_bounds = array<i64: 1>, scalar_prefetch = 0 : i64, scratch_operands = 0 : i64, tpu.core_type = #tpu.core_type<tc>, window_params = [{transform_indices = @transform_0, window_bounds = array<i64: 1, 150, 7, 6>}, {transform_indices = @transform_1, window_bounds = array<i64: 150>}, {transform_indices = @transform_2, window_bounds = array<i64: 1>}, {transform_indices = @transform_3, window_bounds = array<i64: 1, 7, 6>}]} {
    %c0 = arith.constant 0 : index
    %0 = memref.load %arg2[%c0] : memref<150xf32, #tpu.memory_space<smem>>
    %c0_0 = arith.constant 0 : index
    %c0_1 = arith.constant 0 : index
    %c0_2 = arith.constant 0 : index
    %c0_3 = arith.constant 0 : index
    %1 = vector.load %arg1[%c0_0, %c0_1, %c0_2, %c0_3] : memref<1x150x7x6xf32, #tpu.memory_space<vmem>>, vector<1x1x7x6xf32>
    %2 = vector.shape_cast %1 : vector<1x1x7x6xf32> to vector<7x6xf32>
    %3 = vector.broadcast %0 : f32 to vector<7x6xf32>
    %4 = arith.mulf %3, %2 : vector<7x6xf32>
    %c1 = arith.constant 1 : index
    %5 = memref.load %arg2[%c1] : memref<150xf32, #tpu.memory_space<smem>>
    %c0_4 = arith.constant 0 : index
    %c1_5 = arith.constant 1 : index
    %c0_6 = arith.constant 0 : index
    %c0_7 = arith.constant 0 : index
    %6 = vector.load %arg1[%c0_4, %c1_5, %c0_6, %c0_7] : memref<1x150x7x6xf32, #tpu.memory_space<vmem>>, vector<1x1x7x6xf32>
    %7 = vector.shape_cast %6 : vector<1x1x7x6xf32> to vector<7x6xf32>
    %8 = vector.broadcast %5 : f32 to vector<7x6xf32>
    %9 = arith.mulf %8, %7 : vector<7x6xf32>
    %c2 = arith.constant 2 : index
    %10 = memref.load %arg2[%c2] : memref<150xf32, #tpu.memory_space<smem>>
    %c0_8 = arith.constant 0 : index
    %c2_9 = arith.constant 2 : index
    %c0_10 = arith.constant 0 : index
    %c0_11 = arith.constant 0 : index
    %11 = vector.load %arg1[%c0_8, %c2_9, %c0_10, %c0_11] : memref<1x150x7x6xf32, #tpu.memory_space<vmem>>, vector<1x1x7x6xf32>
    %12 = vector.shape_cast %11 : vector<1x1x7x6xf32> to vector<7x6xf32>
    %13 = vector.broadcast %10 : f32 to vector<7x6xf32>
    %14 = arith.mulf %13, %12 : vector<7x6xf32>
    %c3 = arith.constant 3 : index
    %15 = memref.load %arg2[%c3] : memref<150xf32, #tpu.memory_space<smem>>
    %c0_12 = arith.constant 0 : index
    %c3_13 = arith.constant 3 : index
    %c0_14 = arith.constant 0 : index
    %c0_15 = arith.constant 0 : index
    %16 = vector.load %arg1[%c0_12, %c3_13, %c0_14, %c0_15] : memref<1x150x7x6xf32, #tpu.memory_space<vmem>>, vector<1x1x7x6xf32>
    %17 = vector.shape_cast %16 : vector<1x1x7x6xf32> to vector<7x6xf32>
    %18 = vector.broadcast %15 : f32 to vector<7x6xf32>
    %19 = arith.mulf %18, %17 : vector<7x6xf32>
    %c4 = arith.constant 4 : index
    %20 = memref.load %arg2[%c4] : memref<150xf32, #tpu.memory_space<smem>>
    %c0_16 = arith.constant 0 : index
    %c4_17 = arith.constant 4 : index
    %c0_18 = arith.constant 0 : index
    %c0_19 = arith.constant 0 : index
    %21 = vector.load %arg1[%c0_16, %c4_17, %c0_18, %c0_19] : memref<1x150x7x6xf32, #tpu.memory_space<vmem>>, vector<1x1x7x6xf32>
    %22 = vector.shape_cast %21 : vector<1x1x7x6xf32> to vector<7x6xf32>
    %23 = vector.broadcast %20 : f32 to vector<7x6xf32>
    %24 = arith.mulf %23, %22 : vector<7x6xf32>
    %25 = arith.addf %4, %24 : vector<7x6xf32>
    %c5 = arith.constant 5 : index
    %26 = memref.load %arg2[%c5] : memref<150xf32, #tpu.memory_space<smem>>
    %c0_20 = arith.constant 0 : index
    %c5_21 = arith.constant 5 : index
    %c0_22 = arith.constant 0 : index
    %c0_23 = arith.constant 0 : index
    %27 = vector.load %arg1[%c0_20, %c5_21, %c0_22, %c0_23] : memref<1x150x7x6xf32, #tpu.memory_space<vmem>>, vector<1x1x7x6xf32>
    %28 = vector.shape_cast %27 : vector<1x1x7x6xf32> to vector<7x6xf32>
    %29 = vector.broadcast %26 : f32 to vector<7x6xf32>
    %30 = arith.mulf %29, %28 : vector<7x6xf32>
    %31 = arith.addf %9, %30 : vector<7x6xf32>
    %c6 = arith.constant 6 : index
    %32 = memref.load %arg2[%c6] : memref<150xf32, #tpu.memory_space<smem>>
    %c0_24 = arith.constant 0 : index
    %c6_25 = arith.constant 6 : index
    %c0_26 = arith.constant 0 : index
    %c0_27 = arith.constant 0 : index
    %33 = vector.load %arg1[%c0_24, %c6_25, %c0_26, %c0_27] : memref<1x150x7x6xf32, #tpu.memory_space<vmem>>, vector<1x1x7x6xf32>
    %34 = vector.shape_cast %33 : vector<1x1x7x6xf32> to vector<7x6xf32>
    %35 = vector.broadcast %32 : f32 to vector<7x6xf32>
    %36 = arith.mulf %35, %34 : vector<7x6xf32>
    %37 = arith.addf %14, %36 : vector<7x6xf32>
    %c7 = arith.constant 7 : index
    %38 = memref.load %arg2[%c7] : memref<150xf32, #tpu.memory_space<smem>>
    %c0_28 = arith.constant 0 : index
    %c7_29 = arith.constant 7 : index
    %c0_30 = arith.constant 0 : index
    %c0_31 = arith.constant 0 : index
    %39 = vector.load %arg1[%c0_28, %c7_29, %c0_30, %c0_31] : memref<1x150x7x6xf32, #tpu.memory_space<vmem>>, vector<1x1x7x6xf32>
    %40 = vector.shape_cast %39 : vector<1x1x7x6xf32> to vector<7x6xf32>
    %41 = vector.broadcast %38 : f32 to vector<7x6xf32>
    %42 = arith.mulf %41, %40 : vector<7x6xf32>
    %43 = arith.addf %19, %42 : vector<7x6xf32>
    %c8 = arith.constant 8 : index
    %44 = memref.load %arg2[%c8] : memref<150xf32, #tpu.memory_space<smem>>
    %c0_32 = arith.constant 0 : index
    %c8_33 = arith.constant 8 : index
    %c0_34 = arith.constant 0 : index
    %c0_35 = arith.constant 0 : index
    %45 = vector.load %arg1[%c0_32, %c8_33, %c0_34, %c0_35] : memref<1x150x7x6xf32, #tpu.memory_space<vmem>>, vector<1x1x7x6xf32>
    %46 = vector.shape_cast %45 : vector<1x1x7x6xf32> to vector<7x6xf32>
    %47 = vector.broadcast %44 : f32 to vector<7x6xf32>
    %48 = arith.mulf %47, %46 : vector<7x6xf32>
    %49 = arith.addf %25, %48 : vector<7x6xf32>
    %c9 = arith.constant 9 : index
    %50 = memref.load %arg2[%c9] : memref<150xf32, #tpu.memory_space<smem>>
    %c0_36 = arith.constant 0 : index
    %c9_37 = arith.constant 9 : index
    %c0_38 = arith.constant 0 : index
    %c0_39 = arith.constant 0 : index
    %51 = vector.load %arg1[%c0_36, %c9_37, %c0_38, %c0_39] : memref<1x150x7x6xf32, #tpu.memory_space<vmem>>, vector<1x1x7x6xf32>
    %52 = vector.shape_cast %51 : vector<1x1x7x6xf32> to vector<7x6xf32>
    %53 = vector.broadcast %50 : f32 to vector<7x6xf32>
    %54 = arith.mulf %53, %52 : vector<7x6xf32>
    %55 = arith.addf %31, %54 : vector<7x6xf32>
    %c10 = arith.constant 10 : index
    %56 = memref.load %arg2[%c10] : memref<150xf32, #tpu.memory_space<smem>>
    %c0_40 = arith.constant 0 : index
    %c10_41 = arith.constant 10 : index
    %c0_42 = arith.constant 0 : index
    %c0_43 = arith.constant 0 : index
    %57 = vector.load %arg1[%c0_40, %c10_41, %c0_42, %c0_43] : memref<1x150x7x6xf32, #tpu.memory_space<vmem>>, vector<1x1x7x6xf32>
    %58 = vector.shape_cast %57 : vector<1x1x7x6xf32> to vector<7x6xf32>
    %59 = vector.broadcast %56 : f32 to vector<7x6xf32>
    %60 = arith.mulf %59, %58 : vector<7x6xf32>
    %61 = arith.addf %37, %60 : vector<7x6xf32>
    %c11 = arith.constant 11 : index
    %62 = memref.load %arg2[%c11] : memref<150xf32, #tpu.memory_space<smem>>
    %c0_44 = arith.constant 0 : index
    %c11_45 = arith.constant 11 : index
    %c0_46 = arith.constant 0 : index
    %c0_47 = arith.constant 0 : index
    %63 = vector.load %arg1[%c0_44, %c11_45, %c0_46, %c0_47] : memref<1x150x7x6xf32, #tpu.memory_space<vmem>>, vector<1x1x7x6xf32>
    %64 = vector.shape_cast %63 : vector<1x1x7x6xf32> to vector<7x6xf32>
    %65 = vector.broadcast %62 : f32 to vector<7x6xf32>
    %66 = arith.mulf %65, %64 : vector<7x6xf32>
    %67 = arith.addf %43, %66 : vector<7x6xf32>
    %c12 = arith.constant 12 : index
    %68 = memref.load %arg2[%c12] : memref<150xf32, #tpu.memory_space<smem>>
    %c0_48 = arith.constant 0 : index
    %c12_49 = arith.constant 12 : index
    %c0_50 = arith.constant 0 : index
    %c0_51 = arith.constant 0 : index
    %69 = vector.load %arg1[%c0_48, %c12_49, %c0_50, %c0_51] : memref<1x150x7x6xf32, #tpu.memory_space<vmem>>, vector<1x1x7x6xf32>
    %70 = vector.shape_cast %69 : vector<1x1x7x6xf32> to vector<7x6xf32>
    %71 = vector.broadcast %68 : f32 to vector<7x6xf32>
    %72 = arith.mulf %71, %70 : vector<7x6xf32>
    %73 = arith.addf %49, %72 : vector<7x6xf32>
    %c13 = arith.constant 13 : index
    %74 = memref.load %arg2[%c13] : memref<150xf32, #tpu.memory_space<smem>>
    %c0_52 = arith.constant 0 : index
    %c13_53 = arith.constant 13 : index
    %c0_54 = arith.constant 0 : index
    %c0_55 = arith.constant 0 : index
    %75 = vector.load %arg1[%c0_52, %c13_53, %c0_54, %c0_55] : memref<1x150x7x6xf32, #tpu.memory_space<vmem>>, vector<1x1x7x6xf32>
    %76 = vector.shape_cast %75 : vector<1x1x7x6xf32> to vector<7x6xf32>
    %77 = vector.broadcast %74 : f32 to vector<7x6xf32>
    %78 = arith.mulf %77, %76 : vector<7x6xf32>
    %79 = arith.addf %55, %78 : vector<7x6xf32>
    %c14 = arith.constant 14 : index
    %80 = memref.load %arg2[%c14] : memref<150xf32, #tpu.memory_space<smem>>
    %c0_56 = arith.constant 0 : index
    %c14_57 = arith.constant 14 : index
    %c0_58 = arith.constant 0 : index
    %c0_59 = arith.constant 0 : index
    %81 = vector.load %arg1[%c0_56, %c14_57, %c0_58, %c0_59] : memref<1x150x7x6xf32, #tpu.memory_space<vmem>>, vector<1x1x7x6xf32>
    %82 = vector.shape_cast %81 : vector<1x1x7x6xf32> to vector<7x6xf32>
    %83 = vector.broadcast %80 : f32 to vector<7x6xf32>
    %84 = arith.mulf %83, %82 : vector<7x6xf32>
    %85 = arith.addf %61, %84 : vector<7x6xf32>
    %c15 = arith.constant 15 : index
    %86 = memref.load %arg2[%c15] : memref<150xf32, #tpu.memory_space<smem>>
    %c0_60 = arith.constant 0 : index
    %c15_61 = arith.constant 15 : index
    %c0_62 = arith.constant 0 : index
    %c0_63 = arith.constant 0 : index
    %87 = vector.load %arg1[%c0_60, %c15_61, %c0_62, %c0_63] : memref<1x150x7x6xf32, #tpu.memory_space<vmem>>, vector<1x1x7x6xf32>
    %88 = vector.shape_cast %87 : vector<1x1x7x6xf32> to vector<7x6xf32>
    %89 = vector.broadcast %86 : f32 to vector<7x6xf32>
    %90 = arith.mulf %89, %88 : vector<7x6xf32>
    %91 = arith.addf %67, %90 : vector<7x6xf32>
    %c16 = arith.constant 16 : index
    %92 = memref.load %arg2[%c16] : memref<150xf32, #tpu.memory_space<smem>>
    %c0_64 = arith.constant 0 : index
    %c16_65 = arith.constant 16 : index
    %c0_66 = arith.constant 0 : index
    %c0_67 = arith.constant 0 : index
    %93 = vector.load %arg1[%c0_64, %c16_65, %c0_66, %c0_67] : memref<1x150x7x6xf32, #tpu.memory_space<vmem>>, vector<1x1x7x6xf32>
    %94 = vector.shape_cast %93 : vector<1x1x7x6xf32> to vector<7x6xf32>
    %95 = vector.broadcast %92 : f32 to vector<7x6xf32>
    %96 = arith.mulf %95, %94 : vector<7x6xf32>
    %97 = arith.addf %73, %96 : vector<7x6xf32>
    %c17 = arith.constant 17 : index
    %98 = memref.load %arg2[%c17] : memref<150xf32, #tpu.memory_space<smem>>
    %c0_68 = arith.constant 0 : index
    %c17_69 = arith.constant 17 : index
    %c0_70 = arith.constant 0 : index
    %c0_71 = arith.constant 0 : index
    %99 = vector.load %arg1[%c0_68, %c17_69, %c0_70, %c0_71] : memref<1x150x7x6xf32, #tpu.memory_space<vmem>>, vector<1x1x7x6xf32>
    %100 = vector.shape_cast %99 : vector<1x1x7x6xf32> to vector<7x6xf32>
    %101 = vector.broadcast %98 : f32 to vector<7x6xf32>
    %102 = arith.mulf %101, %100 : vector<7x6xf32>
    %103 = arith.addf %79, %102 : vector<7x6xf32>
    %c18 = arith.constant 18 : index
    %104 = memref.load %arg2[%c18] : memref<150xf32, #tpu.memory_space<smem>>
    %c0_72 = arith.constant 0 : index
    %c18_73 = arith.constant 18 : index
    %c0_74 = arith.constant 0 : index
    %c0_75 = arith.constant 0 : index
    %105 = vector.load %arg1[%c0_72, %c18_73, %c0_74, %c0_75] : memref<1x150x7x6xf32, #tpu.memory_space<vmem>>, vector<1x1x7x6xf32>
    %106 = vector.shape_cast %105 : vector<1x1x7x6xf32> to vector<7x6xf32>
    %107 = vector.broadcast %104 : f32 to vector<7x6xf32>
    %108 = arith.mulf %107, %106 : vector<7x6xf32>
    %109 = arith.addf %85, %108 : vector<7x6xf32>
    %c19 = arith.constant 19 : index
    %110 = memref.load %arg2[%c19] : memref<150xf32, #tpu.memory_space<smem>>
    %c0_76 = arith.constant 0 : index
    %c19_77 = arith.constant 19 : index
    %c0_78 = arith.constant 0 : index
    %c0_79 = arith.constant 0 : index
    %111 = vector.load %arg1[%c0_76, %c19_77, %c0_78, %c0_79] : memref<1x150x7x6xf32, #tpu.memory_space<vmem>>, vector<1x1x7x6xf32>
    %112 = vector.shape_cast %111 : vector<1x1x7x6xf32> to vector<7x6xf32>
    %113 = vector.broadcast %110 : f32 to vector<7x6xf32>
    %114 = arith.mulf %113, %112 : vector<7x6xf32>
    %115 = arith.addf %91, %114 : vector<7x6xf32>
    %c20 = arith.constant 20 : index
    %116 = memref.load %arg2[%c20] : memref<150xf32, #tpu.memory_space<smem>>
    %c0_80 = arith.constant 0 : index
    %c20_81 = arith.constant 20 : index
    %c0_82 = arith.constant 0 : index
    %c0_83 = arith.constant 0 : index
    %117 = vector.load %arg1[%c0_80, %c20_81, %c0_82, %c0_83] : memref<1x150x7x6xf32, #tpu.memory_space<vmem>>, vector<1x1x7x6xf32>
    %118 = vector.shape_cast %117 : vector<1x1x7x6xf32> to vector<7x6xf32>
    %119 = vector.broadcast %116 : f32 to vector<7x6xf32>
    %120 = arith.mulf %119, %118 : vector<7x6xf32>
    %121 = arith.addf %97, %120 : vector<7x6xf32>
    %c21 = arith.constant 21 : index
    %122 = memref.load %arg2[%c21] : memref<150xf32, #tpu.memory_space<smem>>
    %c0_84 = arith.constant 0 : index
    %c21_85 = arith.constant 21 : index
    %c0_86 = arith.constant 0 : index
    %c0_87 = arith.constant 0 : index
    %123 = vector.load %arg1[%c0_84, %c21_85, %c0_86, %c0_87] : memref<1x150x7x6xf32, #tpu.memory_space<vmem>>, vector<1x1x7x6xf32>
    %124 = vector.shape_cast %123 : vector<1x1x7x6xf32> to vector<7x6xf32>
    %125 = vector.broadcast %122 : f32 to vector<7x6xf32>
    %126 = arith.mulf %125, %124 : vector<7x6xf32>
    %127 = arith.addf %103, %126 : vector<7x6xf32>
    %c22 = arith.constant 22 : index
    %128 = memref.load %arg2[%c22] : memref<150xf32, #tpu.memory_space<smem>>
    %c0_88 = arith.constant 0 : index
    %c22_89 = arith.constant 22 : index
    %c0_90 = arith.constant 0 : index
    %c0_91 = arith.constant 0 : index
    %129 = vector.load %arg1[%c0_88, %c22_89, %c0_90, %c0_91] : memref<1x150x7x6xf32, #tpu.memory_space<vmem>>, vector<1x1x7x6xf32>
    %130 = vector.shape_cast %129 : vector<1x1x7x6xf32> to vector<7x6xf32>
    %131 = vector.broadcast %128 : f32 to vector<7x6xf32>
    %132 = arith.mulf %131, %130 : vector<7x6xf32>
    %133 = arith.addf %109, %132 : vector<7x6xf32>
    %c23 = arith.constant 23 : index
    %134 = memref.load %arg2[%c23] : memref<150xf32, #tpu.memory_space<smem>>
    %c0_92 = arith.constant 0 : index
    %c23_93 = arith.constant 23 : index
    %c0_94 = arith.constant 0 : index
    %c0_95 = arith.constant 0 : index
    %135 = vector.load %arg1[%c0_92, %c23_93, %c0_94, %c0_95] : memref<1x150x7x6xf32, #tpu.memory_space<vmem>>, vector<1x1x7x6xf32>
    %136 = vector.shape_cast %135 : vector<1x1x7x6xf32> to vector<7x6xf32>
    %137 = vector.broadcast %134 : f32 to vector<7x6xf32>
    %138 = arith.mulf %137, %136 : vector<7x6xf32>
    %139 = arith.addf %115, %138 : vector<7x6xf32>
    %c24 = arith.constant 24 : index
    %140 = memref.load %arg2[%c24] : memref<150xf32, #tpu.memory_space<smem>>
    %c0_96 = arith.constant 0 : index
    %c24_97 = arith.constant 24 : index
    %c0_98 = arith.constant 0 : index
    %c0_99 = arith.constant 0 : index
    %141 = vector.load %arg1[%c0_96, %c24_97, %c0_98, %c0_99] : memref<1x150x7x6xf32, #tpu.memory_space<vmem>>, vector<1x1x7x6xf32>
    %142 = vector.shape_cast %141 : vector<1x1x7x6xf32> to vector<7x6xf32>
    %143 = vector.broadcast %140 : f32 to vector<7x6xf32>
    %144 = arith.mulf %143, %142 : vector<7x6xf32>
    %145 = arith.addf %121, %144 : vector<7x6xf32>
    %c25 = arith.constant 25 : index
    %146 = memref.load %arg2[%c25] : memref<150xf32, #tpu.memory_space<smem>>
    %c0_100 = arith.constant 0 : index
    %c25_101 = arith.constant 25 : index
    %c0_102 = arith.constant 0 : index
    %c0_103 = arith.constant 0 : index
    %147 = vector.load %arg1[%c0_100, %c25_101, %c0_102, %c0_103] : memref<1x150x7x6xf32, #tpu.memory_space<vmem>>, vector<1x1x7x6xf32>
    %148 = vector.shape_cast %147 : vector<1x1x7x6xf32> to vector<7x6xf32>
    %149 = vector.broadcast %146 : f32 to vector<7x6xf32>
    %150 = arith.mulf %149, %148 : vector<7x6xf32>
    %151 = arith.addf %127, %150 : vector<7x6xf32>
    %c26 = arith.constant 26 : index
    %152 = memref.load %arg2[%c26] : memref<150xf32, #tpu.memory_space<smem>>
    %c0_104 = arith.constant 0 : index
    %c26_105 = arith.constant 26 : index
    %c0_106 = arith.constant 0 : index
    %c0_107 = arith.constant 0 : index
    %153 = vector.load %arg1[%c0_104, %c26_105, %c0_106, %c0_107] : memref<1x150x7x6xf32, #tpu.memory_space<vmem>>, vector<1x1x7x6xf32>
    %154 = vector.shape_cast %153 : vector<1x1x7x6xf32> to vector<7x6xf32>
    %155 = vector.broadcast %152 : f32 to vector<7x6xf32>
    %156 = arith.mulf %155, %154 : vector<7x6xf32>
    %157 = arith.addf %133, %156 : vector<7x6xf32>
    %c27 = arith.constant 27 : index
    %158 = memref.load %arg2[%c27] : memref<150xf32, #tpu.memory_space<smem>>
    %c0_108 = arith.constant 0 : index
    %c27_109 = arith.constant 27 : index
    %c0_110 = arith.constant 0 : index
    %c0_111 = arith.constant 0 : index
    %159 = vector.load %arg1[%c0_108, %c27_109, %c0_110, %c0_111] : memref<1x150x7x6xf32, #tpu.memory_space<vmem>>, vector<1x1x7x6xf32>
    %160 = vector.shape_cast %159 : vector<1x1x7x6xf32> to vector<7x6xf32>
    %161 = vector.broadcast %158 : f32 to vector<7x6xf32>
    %162 = arith.mulf %161, %160 : vector<7x6xf32>
    %163 = arith.addf %139, %162 : vector<7x6xf32>
    %c28 = arith.constant 28 : index
    %164 = memref.load %arg2[%c28] : memref<150xf32, #tpu.memory_space<smem>>
    %c0_112 = arith.constant 0 : index
    %c28_113 = arith.constant 28 : index
    %c0_114 = arith.constant 0 : index
    %c0_115 = arith.constant 0 : index
    %165 = vector.load %arg1[%c0_112, %c28_113, %c0_114, %c0_115] : memref<1x150x7x6xf32, #tpu.memory_space<vmem>>, vector<1x1x7x6xf32>
    %166 = vector.shape_cast %165 : vector<1x1x7x6xf32> to vector<7x6xf32>
    %167 = vector.broadcast %164 : f32 to vector<7x6xf32>
    %168 = arith.mulf %167, %166 : vector<7x6xf32>
    %169 = arith.addf %145, %168 : vector<7x6xf32>
    %c29 = arith.constant 29 : index
    %170 = memref.load %arg2[%c29] : memref<150xf32, #tpu.memory_space<smem>>
    %c0_116 = arith.constant 0 : index
    %c29_117 = arith.constant 29 : index
    %c0_118 = arith.constant 0 : index
    %c0_119 = arith.constant 0 : index
    %171 = vector.load %arg1[%c0_116, %c29_117, %c0_118, %c0_119] : memref<1x150x7x6xf32, #tpu.memory_space<vmem>>, vector<1x1x7x6xf32>
    %172 = vector.shape_cast %171 : vector<1x1x7x6xf32> to vector<7x6xf32>
    %173 = vector.broadcast %170 : f32 to vector<7x6xf32>
    %174 = arith.mulf %173, %172 : vector<7x6xf32>
    %175 = arith.addf %151, %174 : vector<7x6xf32>
    %c30 = arith.constant 30 : index
    %176 = memref.load %arg2[%c30] : memref<150xf32, #tpu.memory_space<smem>>
    %c0_120 = arith.constant 0 : index
    %c30_121 = arith.constant 30 : index
    %c0_122 = arith.constant 0 : index
    %c0_123 = arith.constant 0 : index
    %177 = vector.load %arg1[%c0_120, %c30_121, %c0_122, %c0_123] : memref<1x150x7x6xf32, #tpu.memory_space<vmem>>, vector<1x1x7x6xf32>
    %178 = vector.shape_cast %177 : vector<1x1x7x6xf32> to vector<7x6xf32>
    %179 = vector.broadcast %176 : f32 to vector<7x6xf32>
    %180 = arith.mulf %179, %178 : vector<7x6xf32>
    %181 = arith.addf %157, %180 : vector<7x6xf32>
    %c31 = arith.constant 31 : index
    %182 = memref.load %arg2[%c31] : memref<150xf32, #tpu.memory_space<smem>>
    %c0_124 = arith.constant 0 : index
    %c31_125 = arith.constant 31 : index
    %c0_126 = arith.constant 0 : index
    %c0_127 = arith.constant 0 : index
    %183 = vector.load %arg1[%c0_124, %c31_125, %c0_126, %c0_127] : memref<1x150x7x6xf32, #tpu.memory_space<vmem>>, vector<1x1x7x6xf32>
    %184 = vector.shape_cast %183 : vector<1x1x7x6xf32> to vector<7x6xf32>
    %185 = vector.broadcast %182 : f32 to vector<7x6xf32>
    %186 = arith.mulf %185, %184 : vector<7x6xf32>
    %187 = arith.addf %163, %186 : vector<7x6xf32>
    %c32 = arith.constant 32 : index
    %188 = memref.load %arg2[%c32] : memref<150xf32, #tpu.memory_space<smem>>
    %c0_128 = arith.constant 0 : index
    %c32_129 = arith.constant 32 : index
    %c0_130 = arith.constant 0 : index
    %c0_131 = arith.constant 0 : index
    %189 = vector.load %arg1[%c0_128, %c32_129, %c0_130, %c0_131] : memref<1x150x7x6xf32, #tpu.memory_space<vmem>>, vector<1x1x7x6xf32>
    %190 = vector.shape_cast %189 : vector<1x1x7x6xf32> to vector<7x6xf32>
    %191 = vector.broadcast %188 : f32 to vector<7x6xf32>
    %192 = arith.mulf %191, %190 : vector<7x6xf32>
    %193 = arith.addf %169, %192 : vector<7x6xf32>
    %c33 = arith.constant 33 : index
    %194 = memref.load %arg2[%c33] : memref<150xf32, #tpu.memory_space<smem>>
    %c0_132 = arith.constant 0 : index
    %c33_133 = arith.constant 33 : index
    %c0_134 = arith.constant 0 : index
    %c0_135 = arith.constant 0 : index
    %195 = vector.load %arg1[%c0_132, %c33_133, %c0_134, %c0_135] : memref<1x150x7x6xf32, #tpu.memory_space<vmem>>, vector<1x1x7x6xf32>
    %196 = vector.shape_cast %195 : vector<1x1x7x6xf32> to vector<7x6xf32>
    %197 = vector.broadcast %194 : f32 to vector<7x6xf32>
    %198 = arith.mulf %197, %196 : vector<7x6xf32>
    %199 = arith.addf %175, %198 : vector<7x6xf32>
    %c34 = arith.constant 34 : index
    %200 = memref.load %arg2[%c34] : memref<150xf32, #tpu.memory_space<smem>>
    %c0_136 = arith.constant 0 : index
    %c34_137 = arith.constant 34 : index
    %c0_138 = arith.constant 0 : index
    %c0_139 = arith.constant 0 : index
    %201 = vector.load %arg1[%c0_136, %c34_137, %c0_138, %c0_139] : memref<1x150x7x6xf32, #tpu.memory_space<vmem>>, vector<1x1x7x6xf32>
    %202 = vector.shape_cast %201 : vector<1x1x7x6xf32> to vector<7x6xf32>
    %203 = vector.broadcast %200 : f32 to vector<7x6xf32>
    %204 = arith.mulf %203, %202 : vector<7x6xf32>
    %205 = arith.addf %181, %204 : vector<7x6xf32>
    %c35 = arith.constant 35 : index
    %206 = memref.load %arg2[%c35] : memref<150xf32, #tpu.memory_space<smem>>
    %c0_140 = arith.constant 0 : index
    %c35_141 = arith.constant 35 : index
    %c0_142 = arith.constant 0 : index
    %c0_143 = arith.constant 0 : index
    %207 = vector.load %arg1[%c0_140, %c35_141, %c0_142, %c0_143] : memref<1x150x7x6xf32, #tpu.memory_space<vmem>>, vector<1x1x7x6xf32>
    %208 = vector.shape_cast %207 : vector<1x1x7x6xf32> to vector<7x6xf32>
    %209 = vector.broadcast %206 : f32 to vector<7x6xf32>
    %210 = arith.mulf %209, %208 : vector<7x6xf32>
    %211 = arith.addf %187, %210 : vector<7x6xf32>
    %c36 = arith.constant 36 : index
    %212 = memref.load %arg2[%c36] : memref<150xf32, #tpu.memory_space<smem>>
    %c0_144 = arith.constant 0 : index
    %c36_145 = arith.constant 36 : index
    %c0_146 = arith.constant 0 : index
    %c0_147 = arith.constant 0 : index
    %213 = vector.load %arg1[%c0_144, %c36_145, %c0_146, %c0_147] : memref<1x150x7x6xf32, #tpu.memory_space<vmem>>, vector<1x1x7x6xf32>
    %214 = vector.shape_cast %213 : vector<1x1x7x6xf32> to vector<7x6xf32>
    %215 = vector.broadcast %212 : f32 to vector<7x6xf32>
    %216 = arith.mulf %215, %214 : vector<7x6xf32>
    %217 = arith.addf %193, %216 : vector<7x6xf32>
    %c37 = arith.constant 37 : index
    %218 = memref.load %arg2[%c37] : memref<150xf32, #tpu.memory_space<smem>>
    %c0_148 = arith.constant 0 : index
    %c37_149 = arith.constant 37 : index
    %c0_150 = arith.constant 0 : index
    %c0_151 = arith.constant 0 : index
    %219 = vector.load %arg1[%c0_148, %c37_149, %c0_150, %c0_151] : memref<1x150x7x6xf32, #tpu.memory_space<vmem>>, vector<1x1x7x6xf32>
    %220 = vector.shape_cast %219 : vector<1x1x7x6xf32> to vector<7x6xf32>
    %221 = vector.broadcast %218 : f32 to vector<7x6xf32>
    %222 = arith.mulf %221, %220 : vector<7x6xf32>
    %223 = arith.addf %199, %222 : vector<7x6xf32>
    %c38 = arith.constant 38 : index
    %224 = memref.load %arg2[%c38] : memref<150xf32, #tpu.memory_space<smem>>
    %c0_152 = arith.constant 0 : index
    %c38_153 = arith.constant 38 : index
    %c0_154 = arith.constant 0 : index
    %c0_155 = arith.constant 0 : index
    %225 = vector.load %arg1[%c0_152, %c38_153, %c0_154, %c0_155] : memref<1x150x7x6xf32, #tpu.memory_space<vmem>>, vector<1x1x7x6xf32>
    %226 = vector.shape_cast %225 : vector<1x1x7x6xf32> to vector<7x6xf32>
    %227 = vector.broadcast %224 : f32 to vector<7x6xf32>
    %228 = arith.mulf %227, %226 : vector<7x6xf32>
    %229 = arith.addf %205, %228 : vector<7x6xf32>
    %c39 = arith.constant 39 : index
    %230 = memref.load %arg2[%c39] : memref<150xf32, #tpu.memory_space<smem>>
    %c0_156 = arith.constant 0 : index
    %c39_157 = arith.constant 39 : index
    %c0_158 = arith.constant 0 : index
    %c0_159 = arith.constant 0 : index
    %231 = vector.load %arg1[%c0_156, %c39_157, %c0_158, %c0_159] : memref<1x150x7x6xf32, #tpu.memory_space<vmem>>, vector<1x1x7x6xf32>
    %232 = vector.shape_cast %231 : vector<1x1x7x6xf32> to vector<7x6xf32>
    %233 = vector.broadcast %230 : f32 to vector<7x6xf32>
    %234 = arith.mulf %233, %232 : vector<7x6xf32>
    %235 = arith.addf %211, %234 : vector<7x6xf32>
    %c40 = arith.constant 40 : index
    %236 = memref.load %arg2[%c40] : memref<150xf32, #tpu.memory_space<smem>>
    %c0_160 = arith.constant 0 : index
    %c40_161 = arith.constant 40 : index
    %c0_162 = arith.constant 0 : index
    %c0_163 = arith.constant 0 : index
    %237 = vector.load %arg1[%c0_160, %c40_161, %c0_162, %c0_163] : memref<1x150x7x6xf32, #tpu.memory_space<vmem>>, vector<1x1x7x6xf32>
    %238 = vector.shape_cast %237 : vector<1x1x7x6xf32> to vector<7x6xf32>
    %239 = vector.broadcast %236 : f32 to vector<7x6xf32>
    %240 = arith.mulf %239, %238 : vector<7x6xf32>
    %241 = arith.addf %217, %240 : vector<7x6xf32>
    %c41 = arith.constant 41 : index
    %242 = memref.load %arg2[%c41] : memref<150xf32, #tpu.memory_space<smem>>
    %c0_164 = arith.constant 0 : index
    %c41_165 = arith.constant 41 : index
    %c0_166 = arith.constant 0 : index
    %c0_167 = arith.constant 0 : index
    %243 = vector.load %arg1[%c0_164, %c41_165, %c0_166, %c0_167] : memref<1x150x7x6xf32, #tpu.memory_space<vmem>>, vector<1x1x7x6xf32>
    %244 = vector.shape_cast %243 : vector<1x1x7x6xf32> to vector<7x6xf32>
    %245 = vector.broadcast %242 : f32 to vector<7x6xf32>
    %246 = arith.mulf %245, %244 : vector<7x6xf32>
    %247 = arith.addf %223, %246 : vector<7x6xf32>
    %c42 = arith.constant 42 : index
    %248 = memref.load %arg2[%c42] : memref<150xf32, #tpu.memory_space<smem>>
    %c0_168 = arith.constant 0 : index
    %c42_169 = arith.constant 42 : index
    %c0_170 = arith.constant 0 : index
    %c0_171 = arith.constant 0 : index
    %249 = vector.load %arg1[%c0_168, %c42_169, %c0_170, %c0_171] : memref<1x150x7x6xf32, #tpu.memory_space<vmem>>, vector<1x1x7x6xf32>
    %250 = vector.shape_cast %249 : vector<1x1x7x6xf32> to vector<7x6xf32>
    %251 = vector.broadcast %248 : f32 to vector<7x6xf32>
    %252 = arith.mulf %251, %250 : vector<7x6xf32>
    %253 = arith.addf %229, %252 : vector<7x6xf32>
    %c43 = arith.constant 43 : index
    %254 = memref.load %arg2[%c43] : memref<150xf32, #tpu.memory_space<smem>>
    %c0_172 = arith.constant 0 : index
    %c43_173 = arith.constant 43 : index
    %c0_174 = arith.constant 0 : index
    %c0_175 = arith.constant 0 : index
    %255 = vector.load %arg1[%c0_172, %c43_173, %c0_174, %c0_175] : memref<1x150x7x6xf32, #tpu.memory_space<vmem>>, vector<1x1x7x6xf32>
    %256 = vector.shape_cast %255 : vector<1x1x7x6xf32> to vector<7x6xf32>
    %257 = vector.broadcast %254 : f32 to vector<7x6xf32>
    %258 = arith.mulf %257, %256 : vector<7x6xf32>
    %259 = arith.addf %235, %258 : vector<7x6xf32>
    %c44 = arith.constant 44 : index
    %260 = memref.load %arg2[%c44] : memref<150xf32, #tpu.memory_space<smem>>
    %c0_176 = arith.constant 0 : index
    %c44_177 = arith.constant 44 : index
    %c0_178 = arith.constant 0 : index
    %c0_179 = arith.constant 0 : index
    %261 = vector.load %arg1[%c0_176, %c44_177, %c0_178, %c0_179] : memref<1x150x7x6xf32, #tpu.memory_space<vmem>>, vector<1x1x7x6xf32>
    %262 = vector.shape_cast %261 : vector<1x1x7x6xf32> to vector<7x6xf32>
    %263 = vector.broadcast %260 : f32 to vector<7x6xf32>
    %264 = arith.mulf %263, %262 : vector<7x6xf32>
    %265 = arith.addf %241, %264 : vector<7x6xf32>
    %c45 = arith.constant 45 : index
    %266 = memref.load %arg2[%c45] : memref<150xf32, #tpu.memory_space<smem>>
    %c0_180 = arith.constant 0 : index
    %c45_181 = arith.constant 45 : index
    %c0_182 = arith.constant 0 : index
    %c0_183 = arith.constant 0 : index
    %267 = vector.load %arg1[%c0_180, %c45_181, %c0_182, %c0_183] : memref<1x150x7x6xf32, #tpu.memory_space<vmem>>, vector<1x1x7x6xf32>
    %268 = vector.shape_cast %267 : vector<1x1x7x6xf32> to vector<7x6xf32>
    %269 = vector.broadcast %266 : f32 to vector<7x6xf32>
    %270 = arith.mulf %269, %268 : vector<7x6xf32>
    %271 = arith.addf %247, %270 : vector<7x6xf32>
    %c46 = arith.constant 46 : index
    %272 = memref.load %arg2[%c46] : memref<150xf32, #tpu.memory_space<smem>>
    %c0_184 = arith.constant 0 : index
    %c46_185 = arith.constant 46 : index
    %c0_186 = arith.constant 0 : index
    %c0_187 = arith.constant 0 : index
    %273 = vector.load %arg1[%c0_184, %c46_185, %c0_186, %c0_187] : memref<1x150x7x6xf32, #tpu.memory_space<vmem>>, vector<1x1x7x6xf32>
    %274 = vector.shape_cast %273 : vector<1x1x7x6xf32> to vector<7x6xf32>
    %275 = vector.broadcast %272 : f32 to vector<7x6xf32>
    %276 = arith.mulf %275, %274 : vector<7x6xf32>
    %277 = arith.addf %253, %276 : vector<7x6xf32>
    %c47 = arith.constant 47 : index
    %278 = memref.load %arg2[%c47] : memref<150xf32, #tpu.memory_space<smem>>
    %c0_188 = arith.constant 0 : index
    %c47_189 = arith.constant 47 : index
    %c0_190 = arith.constant 0 : index
    %c0_191 = arith.constant 0 : index
    %279 = vector.load %arg1[%c0_188, %c47_189, %c0_190, %c0_191] : memref<1x150x7x6xf32, #tpu.memory_space<vmem>>, vector<1x1x7x6xf32>
    %280 = vector.shape_cast %279 : vector<1x1x7x6xf32> to vector<7x6xf32>
    %281 = vector.broadcast %278 : f32 to vector<7x6xf32>
    %282 = arith.mulf %281, %280 : vector<7x6xf32>
    %283 = arith.addf %259, %282 : vector<7x6xf32>
    %c48 = arith.constant 48 : index
    %284 = memref.load %arg2[%c48] : memref<150xf32, #tpu.memory_space<smem>>
    %c0_192 = arith.constant 0 : index
    %c48_193 = arith.constant 48 : index
    %c0_194 = arith.constant 0 : index
    %c0_195 = arith.constant 0 : index
    %285 = vector.load %arg1[%c0_192, %c48_193, %c0_194, %c0_195] : memref<1x150x7x6xf32, #tpu.memory_space<vmem>>, vector<1x1x7x6xf32>
    %286 = vector.shape_cast %285 : vector<1x1x7x6xf32> to vector<7x6xf32>
    %287 = vector.broadcast %284 : f32 to vector<7x6xf32>
    %288 = arith.mulf %287, %286 : vector<7x6xf32>
    %289 = arith.addf %265, %288 : vector<7x6xf32>
    %c49 = arith.constant 49 : index
    %290 = memref.load %arg2[%c49] : memref<150xf32, #tpu.memory_space<smem>>
    %c0_196 = arith.constant 0 : index
    %c49_197 = arith.constant 49 : index
    %c0_198 = arith.constant 0 : index
    %c0_199 = arith.constant 0 : index
    %291 = vector.load %arg1[%c0_196, %c49_197, %c0_198, %c0_199] : memref<1x150x7x6xf32, #tpu.memory_space<vmem>>, vector<1x1x7x6xf32>
    %292 = vector.shape_cast %291 : vector<1x1x7x6xf32> to vector<7x6xf32>
    %293 = vector.broadcast %290 : f32 to vector<7x6xf32>
    %294 = arith.mulf %293, %292 : vector<7x6xf32>
    %295 = arith.addf %271, %294 : vector<7x6xf32>
    %c50 = arith.constant 50 : index
    %296 = memref.load %arg2[%c50] : memref<150xf32, #tpu.memory_space<smem>>
    %c0_200 = arith.constant 0 : index
    %c50_201 = arith.constant 50 : index
    %c0_202 = arith.constant 0 : index
    %c0_203 = arith.constant 0 : index
    %297 = vector.load %arg1[%c0_200, %c50_201, %c0_202, %c0_203] : memref<1x150x7x6xf32, #tpu.memory_space<vmem>>, vector<1x1x7x6xf32>
    %298 = vector.shape_cast %297 : vector<1x1x7x6xf32> to vector<7x6xf32>
    %299 = vector.broadcast %296 : f32 to vector<7x6xf32>
    %300 = arith.mulf %299, %298 : vector<7x6xf32>
    %301 = arith.addf %277, %300 : vector<7x6xf32>
    %c51 = arith.constant 51 : index
    %302 = memref.load %arg2[%c51] : memref<150xf32, #tpu.memory_space<smem>>
    %c0_204 = arith.constant 0 : index
    %c51_205 = arith.constant 51 : index
    %c0_206 = arith.constant 0 : index
    %c0_207 = arith.constant 0 : index
    %303 = vector.load %arg1[%c0_204, %c51_205, %c0_206, %c0_207] : memref<1x150x7x6xf32, #tpu.memory_space<vmem>>, vector<1x1x7x6xf32>
    %304 = vector.shape_cast %303 : vector<1x1x7x6xf32> to vector<7x6xf32>
    %305 = vector.broadcast %302 : f32 to vector<7x6xf32>
    %306 = arith.mulf %305, %304 : vector<7x6xf32>
    %307 = arith.addf %283, %306 : vector<7x6xf32>
    %c52 = arith.constant 52 : index
    %308 = memref.load %arg2[%c52] : memref<150xf32, #tpu.memory_space<smem>>
    %c0_208 = arith.constant 0 : index
    %c52_209 = arith.constant 52 : index
    %c0_210 = arith.constant 0 : index
    %c0_211 = arith.constant 0 : index
    %309 = vector.load %arg1[%c0_208, %c52_209, %c0_210, %c0_211] : memref<1x150x7x6xf32, #tpu.memory_space<vmem>>, vector<1x1x7x6xf32>
    %310 = vector.shape_cast %309 : vector<1x1x7x6xf32> to vector<7x6xf32>
    %311 = vector.broadcast %308 : f32 to vector<7x6xf32>
    %312 = arith.mulf %311, %310 : vector<7x6xf32>
    %313 = arith.addf %289, %312 : vector<7x6xf32>
    %c53 = arith.constant 53 : index
    %314 = memref.load %arg2[%c53] : memref<150xf32, #tpu.memory_space<smem>>
    %c0_212 = arith.constant 0 : index
    %c53_213 = arith.constant 53 : index
    %c0_214 = arith.constant 0 : index
    %c0_215 = arith.constant 0 : index
    %315 = vector.load %arg1[%c0_212, %c53_213, %c0_214, %c0_215] : memref<1x150x7x6xf32, #tpu.memory_space<vmem>>, vector<1x1x7x6xf32>
    %316 = vector.shape_cast %315 : vector<1x1x7x6xf32> to vector<7x6xf32>
    %317 = vector.broadcast %314 : f32 to vector<7x6xf32>
    %318 = arith.mulf %317, %316 : vector<7x6xf32>
    %319 = arith.addf %295, %318 : vector<7x6xf32>
    %c54 = arith.constant 54 : index
    %320 = memref.load %arg2[%c54] : memref<150xf32, #tpu.memory_space<smem>>
    %c0_216 = arith.constant 0 : index
    %c54_217 = arith.constant 54 : index
    %c0_218 = arith.constant 0 : index
    %c0_219 = arith.constant 0 : index
    %321 = vector.load %arg1[%c0_216, %c54_217, %c0_218, %c0_219] : memref<1x150x7x6xf32, #tpu.memory_space<vmem>>, vector<1x1x7x6xf32>
    %322 = vector.shape_cast %321 : vector<1x1x7x6xf32> to vector<7x6xf32>
    %323 = vector.broadcast %320 : f32 to vector<7x6xf32>
    %324 = arith.mulf %323, %322 : vector<7x6xf32>
    %325 = arith.addf %301, %324 : vector<7x6xf32>
    %c55 = arith.constant 55 : index
    %326 = memref.load %arg2[%c55] : memref<150xf32, #tpu.memory_space<smem>>
    %c0_220 = arith.constant 0 : index
    %c55_221 = arith.constant 55 : index
    %c0_222 = arith.constant 0 : index
    %c0_223 = arith.constant 0 : index
    %327 = vector.load %arg1[%c0_220, %c55_221, %c0_222, %c0_223] : memref<1x150x7x6xf32, #tpu.memory_space<vmem>>, vector<1x1x7x6xf32>
    %328 = vector.shape_cast %327 : vector<1x1x7x6xf32> to vector<7x6xf32>
    %329 = vector.broadcast %326 : f32 to vector<7x6xf32>
    %330 = arith.mulf %329, %328 : vector<7x6xf32>
    %331 = arith.addf %307, %330 : vector<7x6xf32>
    %c56 = arith.constant 56 : index
    %332 = memref.load %arg2[%c56] : memref<150xf32, #tpu.memory_space<smem>>
    %c0_224 = arith.constant 0 : index
    %c56_225 = arith.constant 56 : index
    %c0_226 = arith.constant 0 : index
    %c0_227 = arith.constant 0 : index
    %333 = vector.load %arg1[%c0_224, %c56_225, %c0_226, %c0_227] : memref<1x150x7x6xf32, #tpu.memory_space<vmem>>, vector<1x1x7x6xf32>
    %334 = vector.shape_cast %333 : vector<1x1x7x6xf32> to vector<7x6xf32>
    %335 = vector.broadcast %332 : f32 to vector<7x6xf32>
    %336 = arith.mulf %335, %334 : vector<7x6xf32>
    %337 = arith.addf %313, %336 : vector<7x6xf32>
    %c57 = arith.constant 57 : index
    %338 = memref.load %arg2[%c57] : memref<150xf32, #tpu.memory_space<smem>>
    %c0_228 = arith.constant 0 : index
    %c57_229 = arith.constant 57 : index
    %c0_230 = arith.constant 0 : index
    %c0_231 = arith.constant 0 : index
    %339 = vector.load %arg1[%c0_228, %c57_229, %c0_230, %c0_231] : memref<1x150x7x6xf32, #tpu.memory_space<vmem>>, vector<1x1x7x6xf32>
    %340 = vector.shape_cast %339 : vector<1x1x7x6xf32> to vector<7x6xf32>
    %341 = vector.broadcast %338 : f32 to vector<7x6xf32>
    %342 = arith.mulf %341, %340 : vector<7x6xf32>
    %343 = arith.addf %319, %342 : vector<7x6xf32>
    %c58 = arith.constant 58 : index
    %344 = memref.load %arg2[%c58] : memref<150xf32, #tpu.memory_space<smem>>
    %c0_232 = arith.constant 0 : index
    %c58_233 = arith.constant 58 : index
    %c0_234 = arith.constant 0 : index
    %c0_235 = arith.constant 0 : index
    %345 = vector.load %arg1[%c0_232, %c58_233, %c0_234, %c0_235] : memref<1x150x7x6xf32, #tpu.memory_space<vmem>>, vector<1x1x7x6xf32>
    %346 = vector.shape_cast %345 : vector<1x1x7x6xf32> to vector<7x6xf32>
    %347 = vector.broadcast %344 : f32 to vector<7x6xf32>
    %348 = arith.mulf %347, %346 : vector<7x6xf32>
    %349 = arith.addf %325, %348 : vector<7x6xf32>
    %c59 = arith.constant 59 : index
    %350 = memref.load %arg2[%c59] : memref<150xf32, #tpu.memory_space<smem>>
    %c0_236 = arith.constant 0 : index
    %c59_237 = arith.constant 59 : index
    %c0_238 = arith.constant 0 : index
    %c0_239 = arith.constant 0 : index
    %351 = vector.load %arg1[%c0_236, %c59_237, %c0_238, %c0_239] : memref<1x150x7x6xf32, #tpu.memory_space<vmem>>, vector<1x1x7x6xf32>
    %352 = vector.shape_cast %351 : vector<1x1x7x6xf32> to vector<7x6xf32>
    %353 = vector.broadcast %350 : f32 to vector<7x6xf32>
    %354 = arith.mulf %353, %352 : vector<7x6xf32>
    %355 = arith.addf %331, %354 : vector<7x6xf32>
    %c60 = arith.constant 60 : index
    %356 = memref.load %arg2[%c60] : memref<150xf32, #tpu.memory_space<smem>>
    %c0_240 = arith.constant 0 : index
    %c60_241 = arith.constant 60 : index
    %c0_242 = arith.constant 0 : index
    %c0_243 = arith.constant 0 : index
    %357 = vector.load %arg1[%c0_240, %c60_241, %c0_242, %c0_243] : memref<1x150x7x6xf32, #tpu.memory_space<vmem>>, vector<1x1x7x6xf32>
    %358 = vector.shape_cast %357 : vector<1x1x7x6xf32> to vector<7x6xf32>
    %359 = vector.broadcast %356 : f32 to vector<7x6xf32>
    %360 = arith.mulf %359, %358 : vector<7x6xf32>
    %361 = arith.addf %337, %360 : vector<7x6xf32>
    %c61 = arith.constant 61 : index
    %362 = memref.load %arg2[%c61] : memref<150xf32, #tpu.memory_space<smem>>
    %c0_244 = arith.constant 0 : index
    %c61_245 = arith.constant 61 : index
    %c0_246 = arith.constant 0 : index
    %c0_247 = arith.constant 0 : index
    %363 = vector.load %arg1[%c0_244, %c61_245, %c0_246, %c0_247] : memref<1x150x7x6xf32, #tpu.memory_space<vmem>>, vector<1x1x7x6xf32>
    %364 = vector.shape_cast %363 : vector<1x1x7x6xf32> to vector<7x6xf32>
    %365 = vector.broadcast %362 : f32 to vector<7x6xf32>
    %366 = arith.mulf %365, %364 : vector<7x6xf32>
    %367 = arith.addf %343, %366 : vector<7x6xf32>
    %c62 = arith.constant 62 : index
    %368 = memref.load %arg2[%c62] : memref<150xf32, #tpu.memory_space<smem>>
    %c0_248 = arith.constant 0 : index
    %c62_249 = arith.constant 62 : index
    %c0_250 = arith.constant 0 : index
    %c0_251 = arith.constant 0 : index
    %369 = vector.load %arg1[%c0_248, %c62_249, %c0_250, %c0_251] : memref<1x150x7x6xf32, #tpu.memory_space<vmem>>, vector<1x1x7x6xf32>
    %370 = vector.shape_cast %369 : vector<1x1x7x6xf32> to vector<7x6xf32>
    %371 = vector.broadcast %368 : f32 to vector<7x6xf32>
    %372 = arith.mulf %371, %370 : vector<7x6xf32>
    %373 = arith.addf %349, %372 : vector<7x6xf32>
    %c63 = arith.constant 63 : index
    %374 = memref.load %arg2[%c63] : memref<150xf32, #tpu.memory_space<smem>>
    %c0_252 = arith.constant 0 : index
    %c63_253 = arith.constant 63 : index
    %c0_254 = arith.constant 0 : index
    %c0_255 = arith.constant 0 : index
    %375 = vector.load %arg1[%c0_252, %c63_253, %c0_254, %c0_255] : memref<1x150x7x6xf32, #tpu.memory_space<vmem>>, vector<1x1x7x6xf32>
    %376 = vector.shape_cast %375 : vector<1x1x7x6xf32> to vector<7x6xf32>
    %377 = vector.broadcast %374 : f32 to vector<7x6xf32>
    %378 = arith.mulf %377, %376 : vector<7x6xf32>
    %379 = arith.addf %355, %378 : vector<7x6xf32>
    %c64 = arith.constant 64 : index
    %380 = memref.load %arg2[%c64] : memref<150xf32, #tpu.memory_space<smem>>
    %c0_256 = arith.constant 0 : index
    %c64_257 = arith.constant 64 : index
    %c0_258 = arith.constant 0 : index
    %c0_259 = arith.constant 0 : index
    %381 = vector.load %arg1[%c0_256, %c64_257, %c0_258, %c0_259] : memref<1x150x7x6xf32, #tpu.memory_space<vmem>>, vector<1x1x7x6xf32>
    %382 = vector.shape_cast %381 : vector<1x1x7x6xf32> to vector<7x6xf32>
    %383 = vector.broadcast %380 : f32 to vector<7x6xf32>
    %384 = arith.mulf %383, %382 : vector<7x6xf32>
    %385 = arith.addf %361, %384 : vector<7x6xf32>
    %c65 = arith.constant 65 : index
    %386 = memref.load %arg2[%c65] : memref<150xf32, #tpu.memory_space<smem>>
    %c0_260 = arith.constant 0 : index
    %c65_261 = arith.constant 65 : index
    %c0_262 = arith.constant 0 : index
    %c0_263 = arith.constant 0 : index
    %387 = vector.load %arg1[%c0_260, %c65_261, %c0_262, %c0_263] : memref<1x150x7x6xf32, #tpu.memory_space<vmem>>, vector<1x1x7x6xf32>
    %388 = vector.shape_cast %387 : vector<1x1x7x6xf32> to vector<7x6xf32>
    %389 = vector.broadcast %386 : f32 to vector<7x6xf32>
    %390 = arith.mulf %389, %388 : vector<7x6xf32>
    %391 = arith.addf %367, %390 : vector<7x6xf32>
    %c66 = arith.constant 66 : index
    %392 = memref.load %arg2[%c66] : memref<150xf32, #tpu.memory_space<smem>>
    %c0_264 = arith.constant 0 : index
    %c66_265 = arith.constant 66 : index
    %c0_266 = arith.constant 0 : index
    %c0_267 = arith.constant 0 : index
    %393 = vector.load %arg1[%c0_264, %c66_265, %c0_266, %c0_267] : memref<1x150x7x6xf32, #tpu.memory_space<vmem>>, vector<1x1x7x6xf32>
    %394 = vector.shape_cast %393 : vector<1x1x7x6xf32> to vector<7x6xf32>
    %395 = vector.broadcast %392 : f32 to vector<7x6xf32>
    %396 = arith.mulf %395, %394 : vector<7x6xf32>
    %397 = arith.addf %373, %396 : vector<7x6xf32>
    %c67 = arith.constant 67 : index
    %398 = memref.load %arg2[%c67] : memref<150xf32, #tpu.memory_space<smem>>
    %c0_268 = arith.constant 0 : index
    %c67_269 = arith.constant 67 : index
    %c0_270 = arith.constant 0 : index
    %c0_271 = arith.constant 0 : index
    %399 = vector.load %arg1[%c0_268, %c67_269, %c0_270, %c0_271] : memref<1x150x7x6xf32, #tpu.memory_space<vmem>>, vector<1x1x7x6xf32>
    %400 = vector.shape_cast %399 : vector<1x1x7x6xf32> to vector<7x6xf32>
    %401 = vector.broadcast %398 : f32 to vector<7x6xf32>
    %402 = arith.mulf %401, %400 : vector<7x6xf32>
    %403 = arith.addf %379, %402 : vector<7x6xf32>
    %c68 = arith.constant 68 : index
    %404 = memref.load %arg2[%c68] : memref<150xf32, #tpu.memory_space<smem>>
    %c0_272 = arith.constant 0 : index
    %c68_273 = arith.constant 68 : index
    %c0_274 = arith.constant 0 : index
    %c0_275 = arith.constant 0 : index
    %405 = vector.load %arg1[%c0_272, %c68_273, %c0_274, %c0_275] : memref<1x150x7x6xf32, #tpu.memory_space<vmem>>, vector<1x1x7x6xf32>
    %406 = vector.shape_cast %405 : vector<1x1x7x6xf32> to vector<7x6xf32>
    %407 = vector.broadcast %404 : f32 to vector<7x6xf32>
    %408 = arith.mulf %407, %406 : vector<7x6xf32>
    %409 = arith.addf %385, %408 : vector<7x6xf32>
    %c69 = arith.constant 69 : index
    %410 = memref.load %arg2[%c69] : memref<150xf32, #tpu.memory_space<smem>>
    %c0_276 = arith.constant 0 : index
    %c69_277 = arith.constant 69 : index
    %c0_278 = arith.constant 0 : index
    %c0_279 = arith.constant 0 : index
    %411 = vector.load %arg1[%c0_276, %c69_277, %c0_278, %c0_279] : memref<1x150x7x6xf32, #tpu.memory_space<vmem>>, vector<1x1x7x6xf32>
    %412 = vector.shape_cast %411 : vector<1x1x7x6xf32> to vector<7x6xf32>
    %413 = vector.broadcast %410 : f32 to vector<7x6xf32>
    %414 = arith.mulf %413, %412 : vector<7x6xf32>
    %415 = arith.addf %391, %414 : vector<7x6xf32>
    %c70 = arith.constant 70 : index
    %416 = memref.load %arg2[%c70] : memref<150xf32, #tpu.memory_space<smem>>
    %c0_280 = arith.constant 0 : index
    %c70_281 = arith.constant 70 : index
    %c0_282 = arith.constant 0 : index
    %c0_283 = arith.constant 0 : index
    %417 = vector.load %arg1[%c0_280, %c70_281, %c0_282, %c0_283] : memref<1x150x7x6xf32, #tpu.memory_space<vmem>>, vector<1x1x7x6xf32>
    %418 = vector.shape_cast %417 : vector<1x1x7x6xf32> to vector<7x6xf32>
    %419 = vector.broadcast %416 : f32 to vector<7x6xf32>
    %420 = arith.mulf %419, %418 : vector<7x6xf32>
    %421 = arith.addf %397, %420 : vector<7x6xf32>
    %c71 = arith.constant 71 : index
    %422 = memref.load %arg2[%c71] : memref<150xf32, #tpu.memory_space<smem>>
    %c0_284 = arith.constant 0 : index
    %c71_285 = arith.constant 71 : index
    %c0_286 = arith.constant 0 : index
    %c0_287 = arith.constant 0 : index
    %423 = vector.load %arg1[%c0_284, %c71_285, %c0_286, %c0_287] : memref<1x150x7x6xf32, #tpu.memory_space<vmem>>, vector<1x1x7x6xf32>
    %424 = vector.shape_cast %423 : vector<1x1x7x6xf32> to vector<7x6xf32>
    %425 = vector.broadcast %422 : f32 to vector<7x6xf32>
    %426 = arith.mulf %425, %424 : vector<7x6xf32>
    %427 = arith.addf %403, %426 : vector<7x6xf32>
    %c72 = arith.constant 72 : index
    %428 = memref.load %arg2[%c72] : memref<150xf32, #tpu.memory_space<smem>>
    %c0_288 = arith.constant 0 : index
    %c72_289 = arith.constant 72 : index
    %c0_290 = arith.constant 0 : index
    %c0_291 = arith.constant 0 : index
    %429 = vector.load %arg1[%c0_288, %c72_289, %c0_290, %c0_291] : memref<1x150x7x6xf32, #tpu.memory_space<vmem>>, vector<1x1x7x6xf32>
    %430 = vector.shape_cast %429 : vector<1x1x7x6xf32> to vector<7x6xf32>
    %431 = vector.broadcast %428 : f32 to vector<7x6xf32>
    %432 = arith.mulf %431, %430 : vector<7x6xf32>
    %433 = arith.addf %409, %432 : vector<7x6xf32>
    %c73 = arith.constant 73 : index
    %434 = memref.load %arg2[%c73] : memref<150xf32, #tpu.memory_space<smem>>
    %c0_292 = arith.constant 0 : index
    %c73_293 = arith.constant 73 : index
    %c0_294 = arith.constant 0 : index
    %c0_295 = arith.constant 0 : index
    %435 = vector.load %arg1[%c0_292, %c73_293, %c0_294, %c0_295] : memref<1x150x7x6xf32, #tpu.memory_space<vmem>>, vector<1x1x7x6xf32>
    %436 = vector.shape_cast %435 : vector<1x1x7x6xf32> to vector<7x6xf32>
    %437 = vector.broadcast %434 : f32 to vector<7x6xf32>
    %438 = arith.mulf %437, %436 : vector<7x6xf32>
    %439 = arith.addf %415, %438 : vector<7x6xf32>
    %c74 = arith.constant 74 : index
    %440 = memref.load %arg2[%c74] : memref<150xf32, #tpu.memory_space<smem>>
    %c0_296 = arith.constant 0 : index
    %c74_297 = arith.constant 74 : index
    %c0_298 = arith.constant 0 : index
    %c0_299 = arith.constant 0 : index
    %441 = vector.load %arg1[%c0_296, %c74_297, %c0_298, %c0_299] : memref<1x150x7x6xf32, #tpu.memory_space<vmem>>, vector<1x1x7x6xf32>
    %442 = vector.shape_cast %441 : vector<1x1x7x6xf32> to vector<7x6xf32>
    %443 = vector.broadcast %440 : f32 to vector<7x6xf32>
    %444 = arith.mulf %443, %442 : vector<7x6xf32>
    %445 = arith.addf %421, %444 : vector<7x6xf32>
    %c75 = arith.constant 75 : index
    %446 = memref.load %arg2[%c75] : memref<150xf32, #tpu.memory_space<smem>>
    %c0_300 = arith.constant 0 : index
    %c75_301 = arith.constant 75 : index
    %c0_302 = arith.constant 0 : index
    %c0_303 = arith.constant 0 : index
    %447 = vector.load %arg1[%c0_300, %c75_301, %c0_302, %c0_303] : memref<1x150x7x6xf32, #tpu.memory_space<vmem>>, vector<1x1x7x6xf32>
    %448 = vector.shape_cast %447 : vector<1x1x7x6xf32> to vector<7x6xf32>
    %449 = vector.broadcast %446 : f32 to vector<7x6xf32>
    %450 = arith.mulf %449, %448 : vector<7x6xf32>
    %451 = arith.addf %427, %450 : vector<7x6xf32>
    %c76 = arith.constant 76 : index
    %452 = memref.load %arg2[%c76] : memref<150xf32, #tpu.memory_space<smem>>
    %c0_304 = arith.constant 0 : index
    %c76_305 = arith.constant 76 : index
    %c0_306 = arith.constant 0 : index
    %c0_307 = arith.constant 0 : index
    %453 = vector.load %arg1[%c0_304, %c76_305, %c0_306, %c0_307] : memref<1x150x7x6xf32, #tpu.memory_space<vmem>>, vector<1x1x7x6xf32>
    %454 = vector.shape_cast %453 : vector<1x1x7x6xf32> to vector<7x6xf32>
    %455 = vector.broadcast %452 : f32 to vector<7x6xf32>
    %456 = arith.mulf %455, %454 : vector<7x6xf32>
    %457 = arith.addf %433, %456 : vector<7x6xf32>
    %c77 = arith.constant 77 : index
    %458 = memref.load %arg2[%c77] : memref<150xf32, #tpu.memory_space<smem>>
    %c0_308 = arith.constant 0 : index
    %c77_309 = arith.constant 77 : index
    %c0_310 = arith.constant 0 : index
    %c0_311 = arith.constant 0 : index
    %459 = vector.load %arg1[%c0_308, %c77_309, %c0_310, %c0_311] : memref<1x150x7x6xf32, #tpu.memory_space<vmem>>, vector<1x1x7x6xf32>
    %460 = vector.shape_cast %459 : vector<1x1x7x6xf32> to vector<7x6xf32>
    %461 = vector.broadcast %458 : f32 to vector<7x6xf32>
    %462 = arith.mulf %461, %460 : vector<7x6xf32>
    %463 = arith.addf %439, %462 : vector<7x6xf32>
    %c78 = arith.constant 78 : index
    %464 = memref.load %arg2[%c78] : memref<150xf32, #tpu.memory_space<smem>>
    %c0_312 = arith.constant 0 : index
    %c78_313 = arith.constant 78 : index
    %c0_314 = arith.constant 0 : index
    %c0_315 = arith.constant 0 : index
    %465 = vector.load %arg1[%c0_312, %c78_313, %c0_314, %c0_315] : memref<1x150x7x6xf32, #tpu.memory_space<vmem>>, vector<1x1x7x6xf32>
    %466 = vector.shape_cast %465 : vector<1x1x7x6xf32> to vector<7x6xf32>
    %467 = vector.broadcast %464 : f32 to vector<7x6xf32>
    %468 = arith.mulf %467, %466 : vector<7x6xf32>
    %469 = arith.addf %445, %468 : vector<7x6xf32>
    %c79 = arith.constant 79 : index
    %470 = memref.load %arg2[%c79] : memref<150xf32, #tpu.memory_space<smem>>
    %c0_316 = arith.constant 0 : index
    %c79_317 = arith.constant 79 : index
    %c0_318 = arith.constant 0 : index
    %c0_319 = arith.constant 0 : index
    %471 = vector.load %arg1[%c0_316, %c79_317, %c0_318, %c0_319] : memref<1x150x7x6xf32, #tpu.memory_space<vmem>>, vector<1x1x7x6xf32>
    %472 = vector.shape_cast %471 : vector<1x1x7x6xf32> to vector<7x6xf32>
    %473 = vector.broadcast %470 : f32 to vector<7x6xf32>
    %474 = arith.mulf %473, %472 : vector<7x6xf32>
    %475 = arith.addf %451, %474 : vector<7x6xf32>
    %c80 = arith.constant 80 : index
    %476 = memref.load %arg2[%c80] : memref<150xf32, #tpu.memory_space<smem>>
    %c0_320 = arith.constant 0 : index
    %c80_321 = arith.constant 80 : index
    %c0_322 = arith.constant 0 : index
    %c0_323 = arith.constant 0 : index
    %477 = vector.load %arg1[%c0_320, %c80_321, %c0_322, %c0_323] : memref<1x150x7x6xf32, #tpu.memory_space<vmem>>, vector<1x1x7x6xf32>
    %478 = vector.shape_cast %477 : vector<1x1x7x6xf32> to vector<7x6xf32>
    %479 = vector.broadcast %476 : f32 to vector<7x6xf32>
    %480 = arith.mulf %479, %478 : vector<7x6xf32>
    %481 = arith.addf %457, %480 : vector<7x6xf32>
    %c81 = arith.constant 81 : index
    %482 = memref.load %arg2[%c81] : memref<150xf32, #tpu.memory_space<smem>>
    %c0_324 = arith.constant 0 : index
    %c81_325 = arith.constant 81 : index
    %c0_326 = arith.constant 0 : index
    %c0_327 = arith.constant 0 : index
    %483 = vector.load %arg1[%c0_324, %c81_325, %c0_326, %c0_327] : memref<1x150x7x6xf32, #tpu.memory_space<vmem>>, vector<1x1x7x6xf32>
    %484 = vector.shape_cast %483 : vector<1x1x7x6xf32> to vector<7x6xf32>
    %485 = vector.broadcast %482 : f32 to vector<7x6xf32>
    %486 = arith.mulf %485, %484 : vector<7x6xf32>
    %487 = arith.addf %463, %486 : vector<7x6xf32>
    %c82 = arith.constant 82 : index
    %488 = memref.load %arg2[%c82] : memref<150xf32, #tpu.memory_space<smem>>
    %c0_328 = arith.constant 0 : index
    %c82_329 = arith.constant 82 : index
    %c0_330 = arith.constant 0 : index
    %c0_331 = arith.constant 0 : index
    %489 = vector.load %arg1[%c0_328, %c82_329, %c0_330, %c0_331] : memref<1x150x7x6xf32, #tpu.memory_space<vmem>>, vector<1x1x7x6xf32>
    %490 = vector.shape_cast %489 : vector<1x1x7x6xf32> to vector<7x6xf32>
    %491 = vector.broadcast %488 : f32 to vector<7x6xf32>
    %492 = arith.mulf %491, %490 : vector<7x6xf32>
    %493 = arith.addf %469, %492 : vector<7x6xf32>
    %c83 = arith.constant 83 : index
    %494 = memref.load %arg2[%c83] : memref<150xf32, #tpu.memory_space<smem>>
    %c0_332 = arith.constant 0 : index
    %c83_333 = arith.constant 83 : index
    %c0_334 = arith.constant 0 : index
    %c0_335 = arith.constant 0 : index
    %495 = vector.load %arg1[%c0_332, %c83_333, %c0_334, %c0_335] : memref<1x150x7x6xf32, #tpu.memory_space<vmem>>, vector<1x1x7x6xf32>
    %496 = vector.shape_cast %495 : vector<1x1x7x6xf32> to vector<7x6xf32>
    %497 = vector.broadcast %494 : f32 to vector<7x6xf32>
    %498 = arith.mulf %497, %496 : vector<7x6xf32>
    %499 = arith.addf %475, %498 : vector<7x6xf32>
    %c84 = arith.constant 84 : index
    %500 = memref.load %arg2[%c84] : memref<150xf32, #tpu.memory_space<smem>>
    %c0_336 = arith.constant 0 : index
    %c84_337 = arith.constant 84 : index
    %c0_338 = arith.constant 0 : index
    %c0_339 = arith.constant 0 : index
    %501 = vector.load %arg1[%c0_336, %c84_337, %c0_338, %c0_339] : memref<1x150x7x6xf32, #tpu.memory_space<vmem>>, vector<1x1x7x6xf32>
    %502 = vector.shape_cast %501 : vector<1x1x7x6xf32> to vector<7x6xf32>
    %503 = vector.broadcast %500 : f32 to vector<7x6xf32>
    %504 = arith.mulf %503, %502 : vector<7x6xf32>
    %505 = arith.addf %481, %504 : vector<7x6xf32>
    %c85 = arith.constant 85 : index
    %506 = memref.load %arg2[%c85] : memref<150xf32, #tpu.memory_space<smem>>
    %c0_340 = arith.constant 0 : index
    %c85_341 = arith.constant 85 : index
    %c0_342 = arith.constant 0 : index
    %c0_343 = arith.constant 0 : index
    %507 = vector.load %arg1[%c0_340, %c85_341, %c0_342, %c0_343] : memref<1x150x7x6xf32, #tpu.memory_space<vmem>>, vector<1x1x7x6xf32>
    %508 = vector.shape_cast %507 : vector<1x1x7x6xf32> to vector<7x6xf32>
    %509 = vector.broadcast %506 : f32 to vector<7x6xf32>
    %510 = arith.mulf %509, %508 : vector<7x6xf32>
    %511 = arith.addf %487, %510 : vector<7x6xf32>
    %c86 = arith.constant 86 : index
    %512 = memref.load %arg2[%c86] : memref<150xf32, #tpu.memory_space<smem>>
    %c0_344 = arith.constant 0 : index
    %c86_345 = arith.constant 86 : index
    %c0_346 = arith.constant 0 : index
    %c0_347 = arith.constant 0 : index
    %513 = vector.load %arg1[%c0_344, %c86_345, %c0_346, %c0_347] : memref<1x150x7x6xf32, #tpu.memory_space<vmem>>, vector<1x1x7x6xf32>
    %514 = vector.shape_cast %513 : vector<1x1x7x6xf32> to vector<7x6xf32>
    %515 = vector.broadcast %512 : f32 to vector<7x6xf32>
    %516 = arith.mulf %515, %514 : vector<7x6xf32>
    %517 = arith.addf %493, %516 : vector<7x6xf32>
    %c87 = arith.constant 87 : index
    %518 = memref.load %arg2[%c87] : memref<150xf32, #tpu.memory_space<smem>>
    %c0_348 = arith.constant 0 : index
    %c87_349 = arith.constant 87 : index
    %c0_350 = arith.constant 0 : index
    %c0_351 = arith.constant 0 : index
    %519 = vector.load %arg1[%c0_348, %c87_349, %c0_350, %c0_351] : memref<1x150x7x6xf32, #tpu.memory_space<vmem>>, vector<1x1x7x6xf32>
    %520 = vector.shape_cast %519 : vector<1x1x7x6xf32> to vector<7x6xf32>
    %521 = vector.broadcast %518 : f32 to vector<7x6xf32>
    %522 = arith.mulf %521, %520 : vector<7x6xf32>
    %523 = arith.addf %499, %522 : vector<7x6xf32>
    %c88 = arith.constant 88 : index
    %524 = memref.load %arg2[%c88] : memref<150xf32, #tpu.memory_space<smem>>
    %c0_352 = arith.constant 0 : index
    %c88_353 = arith.constant 88 : index
    %c0_354 = arith.constant 0 : index
    %c0_355 = arith.constant 0 : index
    %525 = vector.load %arg1[%c0_352, %c88_353, %c0_354, %c0_355] : memref<1x150x7x6xf32, #tpu.memory_space<vmem>>, vector<1x1x7x6xf32>
    %526 = vector.shape_cast %525 : vector<1x1x7x6xf32> to vector<7x6xf32>
    %527 = vector.broadcast %524 : f32 to vector<7x6xf32>
    %528 = arith.mulf %527, %526 : vector<7x6xf32>
    %529 = arith.addf %505, %528 : vector<7x6xf32>
    %c89 = arith.constant 89 : index
    %530 = memref.load %arg2[%c89] : memref<150xf32, #tpu.memory_space<smem>>
    %c0_356 = arith.constant 0 : index
    %c89_357 = arith.constant 89 : index
    %c0_358 = arith.constant 0 : index
    %c0_359 = arith.constant 0 : index
    %531 = vector.load %arg1[%c0_356, %c89_357, %c0_358, %c0_359] : memref<1x150x7x6xf32, #tpu.memory_space<vmem>>, vector<1x1x7x6xf32>
    %532 = vector.shape_cast %531 : vector<1x1x7x6xf32> to vector<7x6xf32>
    %533 = vector.broadcast %530 : f32 to vector<7x6xf32>
    %534 = arith.mulf %533, %532 : vector<7x6xf32>
    %535 = arith.addf %511, %534 : vector<7x6xf32>
    %c90 = arith.constant 90 : index
    %536 = memref.load %arg2[%c90] : memref<150xf32, #tpu.memory_space<smem>>
    %c0_360 = arith.constant 0 : index
    %c90_361 = arith.constant 90 : index
    %c0_362 = arith.constant 0 : index
    %c0_363 = arith.constant 0 : index
    %537 = vector.load %arg1[%c0_360, %c90_361, %c0_362, %c0_363] : memref<1x150x7x6xf32, #tpu.memory_space<vmem>>, vector<1x1x7x6xf32>
    %538 = vector.shape_cast %537 : vector<1x1x7x6xf32> to vector<7x6xf32>
    %539 = vector.broadcast %536 : f32 to vector<7x6xf32>
    %540 = arith.mulf %539, %538 : vector<7x6xf32>
    %541 = arith.addf %517, %540 : vector<7x6xf32>
    %c91 = arith.constant 91 : index
    %542 = memref.load %arg2[%c91] : memref<150xf32, #tpu.memory_space<smem>>
    %c0_364 = arith.constant 0 : index
    %c91_365 = arith.constant 91 : index
    %c0_366 = arith.constant 0 : index
    %c0_367 = arith.constant 0 : index
    %543 = vector.load %arg1[%c0_364, %c91_365, %c0_366, %c0_367] : memref<1x150x7x6xf32, #tpu.memory_space<vmem>>, vector<1x1x7x6xf32>
    %544 = vector.shape_cast %543 : vector<1x1x7x6xf32> to vector<7x6xf32>
    %545 = vector.broadcast %542 : f32 to vector<7x6xf32>
    %546 = arith.mulf %545, %544 : vector<7x6xf32>
    %547 = arith.addf %523, %546 : vector<7x6xf32>
    %c92 = arith.constant 92 : index
    %548 = memref.load %arg2[%c92] : memref<150xf32, #tpu.memory_space<smem>>
    %c0_368 = arith.constant 0 : index
    %c92_369 = arith.constant 92 : index
    %c0_370 = arith.constant 0 : index
    %c0_371 = arith.constant 0 : index
    %549 = vector.load %arg1[%c0_368, %c92_369, %c0_370, %c0_371] : memref<1x150x7x6xf32, #tpu.memory_space<vmem>>, vector<1x1x7x6xf32>
    %550 = vector.shape_cast %549 : vector<1x1x7x6xf32> to vector<7x6xf32>
    %551 = vector.broadcast %548 : f32 to vector<7x6xf32>
    %552 = arith.mulf %551, %550 : vector<7x6xf32>
    %553 = arith.addf %529, %552 : vector<7x6xf32>
    %c93 = arith.constant 93 : index
    %554 = memref.load %arg2[%c93] : memref<150xf32, #tpu.memory_space<smem>>
    %c0_372 = arith.constant 0 : index
    %c93_373 = arith.constant 93 : index
    %c0_374 = arith.constant 0 : index
    %c0_375 = arith.constant 0 : index
    %555 = vector.load %arg1[%c0_372, %c93_373, %c0_374, %c0_375] : memref<1x150x7x6xf32, #tpu.memory_space<vmem>>, vector<1x1x7x6xf32>
    %556 = vector.shape_cast %555 : vector<1x1x7x6xf32> to vector<7x6xf32>
    %557 = vector.broadcast %554 : f32 to vector<7x6xf32>
    %558 = arith.mulf %557, %556 : vector<7x6xf32>
    %559 = arith.addf %535, %558 : vector<7x6xf32>
    %c94 = arith.constant 94 : index
    %560 = memref.load %arg2[%c94] : memref<150xf32, #tpu.memory_space<smem>>
    %c0_376 = arith.constant 0 : index
    %c94_377 = arith.constant 94 : index
    %c0_378 = arith.constant 0 : index
    %c0_379 = arith.constant 0 : index
    %561 = vector.load %arg1[%c0_376, %c94_377, %c0_378, %c0_379] : memref<1x150x7x6xf32, #tpu.memory_space<vmem>>, vector<1x1x7x6xf32>
    %562 = vector.shape_cast %561 : vector<1x1x7x6xf32> to vector<7x6xf32>
    %563 = vector.broadcast %560 : f32 to vector<7x6xf32>
    %564 = arith.mulf %563, %562 : vector<7x6xf32>
    %565 = arith.addf %541, %564 : vector<7x6xf32>
    %c95 = arith.constant 95 : index
    %566 = memref.load %arg2[%c95] : memref<150xf32, #tpu.memory_space<smem>>
    %c0_380 = arith.constant 0 : index
    %c95_381 = arith.constant 95 : index
    %c0_382 = arith.constant 0 : index
    %c0_383 = arith.constant 0 : index
    %567 = vector.load %arg1[%c0_380, %c95_381, %c0_382, %c0_383] : memref<1x150x7x6xf32, #tpu.memory_space<vmem>>, vector<1x1x7x6xf32>
    %568 = vector.shape_cast %567 : vector<1x1x7x6xf32> to vector<7x6xf32>
    %569 = vector.broadcast %566 : f32 to vector<7x6xf32>
    %570 = arith.mulf %569, %568 : vector<7x6xf32>
    %571 = arith.addf %547, %570 : vector<7x6xf32>
    %c96 = arith.constant 96 : index
    %572 = memref.load %arg2[%c96] : memref<150xf32, #tpu.memory_space<smem>>
    %c0_384 = arith.constant 0 : index
    %c96_385 = arith.constant 96 : index
    %c0_386 = arith.constant 0 : index
    %c0_387 = arith.constant 0 : index
    %573 = vector.load %arg1[%c0_384, %c96_385, %c0_386, %c0_387] : memref<1x150x7x6xf32, #tpu.memory_space<vmem>>, vector<1x1x7x6xf32>
    %574 = vector.shape_cast %573 : vector<1x1x7x6xf32> to vector<7x6xf32>
    %575 = vector.broadcast %572 : f32 to vector<7x6xf32>
    %576 = arith.mulf %575, %574 : vector<7x6xf32>
    %577 = arith.addf %553, %576 : vector<7x6xf32>
    %c97 = arith.constant 97 : index
    %578 = memref.load %arg2[%c97] : memref<150xf32, #tpu.memory_space<smem>>
    %c0_388 = arith.constant 0 : index
    %c97_389 = arith.constant 97 : index
    %c0_390 = arith.constant 0 : index
    %c0_391 = arith.constant 0 : index
    %579 = vector.load %arg1[%c0_388, %c97_389, %c0_390, %c0_391] : memref<1x150x7x6xf32, #tpu.memory_space<vmem>>, vector<1x1x7x6xf32>
    %580 = vector.shape_cast %579 : vector<1x1x7x6xf32> to vector<7x6xf32>
    %581 = vector.broadcast %578 : f32 to vector<7x6xf32>
    %582 = arith.mulf %581, %580 : vector<7x6xf32>
    %583 = arith.addf %559, %582 : vector<7x6xf32>
    %c98 = arith.constant 98 : index
    %584 = memref.load %arg2[%c98] : memref<150xf32, #tpu.memory_space<smem>>
    %c0_392 = arith.constant 0 : index
    %c98_393 = arith.constant 98 : index
    %c0_394 = arith.constant 0 : index
    %c0_395 = arith.constant 0 : index
    %585 = vector.load %arg1[%c0_392, %c98_393, %c0_394, %c0_395] : memref<1x150x7x6xf32, #tpu.memory_space<vmem>>, vector<1x1x7x6xf32>
    %586 = vector.shape_cast %585 : vector<1x1x7x6xf32> to vector<7x6xf32>
    %587 = vector.broadcast %584 : f32 to vector<7x6xf32>
    %588 = arith.mulf %587, %586 : vector<7x6xf32>
    %589 = arith.addf %565, %588 : vector<7x6xf32>
    %c99 = arith.constant 99 : index
    %590 = memref.load %arg2[%c99] : memref<150xf32, #tpu.memory_space<smem>>
    %c0_396 = arith.constant 0 : index
    %c99_397 = arith.constant 99 : index
    %c0_398 = arith.constant 0 : index
    %c0_399 = arith.constant 0 : index
    %591 = vector.load %arg1[%c0_396, %c99_397, %c0_398, %c0_399] : memref<1x150x7x6xf32, #tpu.memory_space<vmem>>, vector<1x1x7x6xf32>
    %592 = vector.shape_cast %591 : vector<1x1x7x6xf32> to vector<7x6xf32>
    %593 = vector.broadcast %590 : f32 to vector<7x6xf32>
    %594 = arith.mulf %593, %592 : vector<7x6xf32>
    %595 = arith.addf %571, %594 : vector<7x6xf32>
    %c100 = arith.constant 100 : index
    %596 = memref.load %arg2[%c100] : memref<150xf32, #tpu.memory_space<smem>>
    %c0_400 = arith.constant 0 : index
    %c100_401 = arith.constant 100 : index
    %c0_402 = arith.constant 0 : index
    %c0_403 = arith.constant 0 : index
    %597 = vector.load %arg1[%c0_400, %c100_401, %c0_402, %c0_403] : memref<1x150x7x6xf32, #tpu.memory_space<vmem>>, vector<1x1x7x6xf32>
    %598 = vector.shape_cast %597 : vector<1x1x7x6xf32> to vector<7x6xf32>
    %599 = vector.broadcast %596 : f32 to vector<7x6xf32>
    %600 = arith.mulf %599, %598 : vector<7x6xf32>
    %601 = arith.addf %577, %600 : vector<7x6xf32>
    %c101 = arith.constant 101 : index
    %602 = memref.load %arg2[%c101] : memref<150xf32, #tpu.memory_space<smem>>
    %c0_404 = arith.constant 0 : index
    %c101_405 = arith.constant 101 : index
    %c0_406 = arith.constant 0 : index
    %c0_407 = arith.constant 0 : index
    %603 = vector.load %arg1[%c0_404, %c101_405, %c0_406, %c0_407] : memref<1x150x7x6xf32, #tpu.memory_space<vmem>>, vector<1x1x7x6xf32>
    %604 = vector.shape_cast %603 : vector<1x1x7x6xf32> to vector<7x6xf32>
    %605 = vector.broadcast %602 : f32 to vector<7x6xf32>
    %606 = arith.mulf %605, %604 : vector<7x6xf32>
    %607 = arith.addf %583, %606 : vector<7x6xf32>
    %c102 = arith.constant 102 : index
    %608 = memref.load %arg2[%c102] : memref<150xf32, #tpu.memory_space<smem>>
    %c0_408 = arith.constant 0 : index
    %c102_409 = arith.constant 102 : index
    %c0_410 = arith.constant 0 : index
    %c0_411 = arith.constant 0 : index
    %609 = vector.load %arg1[%c0_408, %c102_409, %c0_410, %c0_411] : memref<1x150x7x6xf32, #tpu.memory_space<vmem>>, vector<1x1x7x6xf32>
    %610 = vector.shape_cast %609 : vector<1x1x7x6xf32> to vector<7x6xf32>
    %611 = vector.broadcast %608 : f32 to vector<7x6xf32>
    %612 = arith.mulf %611, %610 : vector<7x6xf32>
    %613 = arith.addf %589, %612 : vector<7x6xf32>
    %c103 = arith.constant 103 : index
    %614 = memref.load %arg2[%c103] : memref<150xf32, #tpu.memory_space<smem>>
    %c0_412 = arith.constant 0 : index
    %c103_413 = arith.constant 103 : index
    %c0_414 = arith.constant 0 : index
    %c0_415 = arith.constant 0 : index
    %615 = vector.load %arg1[%c0_412, %c103_413, %c0_414, %c0_415] : memref<1x150x7x6xf32, #tpu.memory_space<vmem>>, vector<1x1x7x6xf32>
    %616 = vector.shape_cast %615 : vector<1x1x7x6xf32> to vector<7x6xf32>
    %617 = vector.broadcast %614 : f32 to vector<7x6xf32>
    %618 = arith.mulf %617, %616 : vector<7x6xf32>
    %619 = arith.addf %595, %618 : vector<7x6xf32>
    %c104 = arith.constant 104 : index
    %620 = memref.load %arg2[%c104] : memref<150xf32, #tpu.memory_space<smem>>
    %c0_416 = arith.constant 0 : index
    %c104_417 = arith.constant 104 : index
    %c0_418 = arith.constant 0 : index
    %c0_419 = arith.constant 0 : index
    %621 = vector.load %arg1[%c0_416, %c104_417, %c0_418, %c0_419] : memref<1x150x7x6xf32, #tpu.memory_space<vmem>>, vector<1x1x7x6xf32>
    %622 = vector.shape_cast %621 : vector<1x1x7x6xf32> to vector<7x6xf32>
    %623 = vector.broadcast %620 : f32 to vector<7x6xf32>
    %624 = arith.mulf %623, %622 : vector<7x6xf32>
    %625 = arith.addf %601, %624 : vector<7x6xf32>
    %c105 = arith.constant 105 : index
    %626 = memref.load %arg2[%c105] : memref<150xf32, #tpu.memory_space<smem>>
    %c0_420 = arith.constant 0 : index
    %c105_421 = arith.constant 105 : index
    %c0_422 = arith.constant 0 : index
    %c0_423 = arith.constant 0 : index
    %627 = vector.load %arg1[%c0_420, %c105_421, %c0_422, %c0_423] : memref<1x150x7x6xf32, #tpu.memory_space<vmem>>, vector<1x1x7x6xf32>
    %628 = vector.shape_cast %627 : vector<1x1x7x6xf32> to vector<7x6xf32>
    %629 = vector.broadcast %626 : f32 to vector<7x6xf32>
    %630 = arith.mulf %629, %628 : vector<7x6xf32>
    %631 = arith.addf %607, %630 : vector<7x6xf32>
    %c106 = arith.constant 106 : index
    %632 = memref.load %arg2[%c106] : memref<150xf32, #tpu.memory_space<smem>>
    %c0_424 = arith.constant 0 : index
    %c106_425 = arith.constant 106 : index
    %c0_426 = arith.constant 0 : index
    %c0_427 = arith.constant 0 : index
    %633 = vector.load %arg1[%c0_424, %c106_425, %c0_426, %c0_427] : memref<1x150x7x6xf32, #tpu.memory_space<vmem>>, vector<1x1x7x6xf32>
    %634 = vector.shape_cast %633 : vector<1x1x7x6xf32> to vector<7x6xf32>
    %635 = vector.broadcast %632 : f32 to vector<7x6xf32>
    %636 = arith.mulf %635, %634 : vector<7x6xf32>
    %637 = arith.addf %613, %636 : vector<7x6xf32>
    %c107 = arith.constant 107 : index
    %638 = memref.load %arg2[%c107] : memref<150xf32, #tpu.memory_space<smem>>
    %c0_428 = arith.constant 0 : index
    %c107_429 = arith.constant 107 : index
    %c0_430 = arith.constant 0 : index
    %c0_431 = arith.constant 0 : index
    %639 = vector.load %arg1[%c0_428, %c107_429, %c0_430, %c0_431] : memref<1x150x7x6xf32, #tpu.memory_space<vmem>>, vector<1x1x7x6xf32>
    %640 = vector.shape_cast %639 : vector<1x1x7x6xf32> to vector<7x6xf32>
    %641 = vector.broadcast %638 : f32 to vector<7x6xf32>
    %642 = arith.mulf %641, %640 : vector<7x6xf32>
    %643 = arith.addf %619, %642 : vector<7x6xf32>
    %c108 = arith.constant 108 : index
    %644 = memref.load %arg2[%c108] : memref<150xf32, #tpu.memory_space<smem>>
    %c0_432 = arith.constant 0 : index
    %c108_433 = arith.constant 108 : index
    %c0_434 = arith.constant 0 : index
    %c0_435 = arith.constant 0 : index
    %645 = vector.load %arg1[%c0_432, %c108_433, %c0_434, %c0_435] : memref<1x150x7x6xf32, #tpu.memory_space<vmem>>, vector<1x1x7x6xf32>
    %646 = vector.shape_cast %645 : vector<1x1x7x6xf32> to vector<7x6xf32>
    %647 = vector.broadcast %644 : f32 to vector<7x6xf32>
    %648 = arith.mulf %647, %646 : vector<7x6xf32>
    %649 = arith.addf %625, %648 : vector<7x6xf32>
    %c109 = arith.constant 109 : index
    %650 = memref.load %arg2[%c109] : memref<150xf32, #tpu.memory_space<smem>>
    %c0_436 = arith.constant 0 : index
    %c109_437 = arith.constant 109 : index
    %c0_438 = arith.constant 0 : index
    %c0_439 = arith.constant 0 : index
    %651 = vector.load %arg1[%c0_436, %c109_437, %c0_438, %c0_439] : memref<1x150x7x6xf32, #tpu.memory_space<vmem>>, vector<1x1x7x6xf32>
    %652 = vector.shape_cast %651 : vector<1x1x7x6xf32> to vector<7x6xf32>
    %653 = vector.broadcast %650 : f32 to vector<7x6xf32>
    %654 = arith.mulf %653, %652 : vector<7x6xf32>
    %655 = arith.addf %631, %654 : vector<7x6xf32>
    %c110 = arith.constant 110 : index
    %656 = memref.load %arg2[%c110] : memref<150xf32, #tpu.memory_space<smem>>
    %c0_440 = arith.constant 0 : index
    %c110_441 = arith.constant 110 : index
    %c0_442 = arith.constant 0 : index
    %c0_443 = arith.constant 0 : index
    %657 = vector.load %arg1[%c0_440, %c110_441, %c0_442, %c0_443] : memref<1x150x7x6xf32, #tpu.memory_space<vmem>>, vector<1x1x7x6xf32>
    %658 = vector.shape_cast %657 : vector<1x1x7x6xf32> to vector<7x6xf32>
    %659 = vector.broadcast %656 : f32 to vector<7x6xf32>
    %660 = arith.mulf %659, %658 : vector<7x6xf32>
    %661 = arith.addf %637, %660 : vector<7x6xf32>
    %c111 = arith.constant 111 : index
    %662 = memref.load %arg2[%c111] : memref<150xf32, #tpu.memory_space<smem>>
    %c0_444 = arith.constant 0 : index
    %c111_445 = arith.constant 111 : index
    %c0_446 = arith.constant 0 : index
    %c0_447 = arith.constant 0 : index
    %663 = vector.load %arg1[%c0_444, %c111_445, %c0_446, %c0_447] : memref<1x150x7x6xf32, #tpu.memory_space<vmem>>, vector<1x1x7x6xf32>
    %664 = vector.shape_cast %663 : vector<1x1x7x6xf32> to vector<7x6xf32>
    %665 = vector.broadcast %662 : f32 to vector<7x6xf32>
    %666 = arith.mulf %665, %664 : vector<7x6xf32>
    %667 = arith.addf %643, %666 : vector<7x6xf32>
    %c112 = arith.constant 112 : index
    %668 = memref.load %arg2[%c112] : memref<150xf32, #tpu.memory_space<smem>>
    %c0_448 = arith.constant 0 : index
    %c112_449 = arith.constant 112 : index
    %c0_450 = arith.constant 0 : index
    %c0_451 = arith.constant 0 : index
    %669 = vector.load %arg1[%c0_448, %c112_449, %c0_450, %c0_451] : memref<1x150x7x6xf32, #tpu.memory_space<vmem>>, vector<1x1x7x6xf32>
    %670 = vector.shape_cast %669 : vector<1x1x7x6xf32> to vector<7x6xf32>
    %671 = vector.broadcast %668 : f32 to vector<7x6xf32>
    %672 = arith.mulf %671, %670 : vector<7x6xf32>
    %673 = arith.addf %649, %672 : vector<7x6xf32>
    %c113 = arith.constant 113 : index
    %674 = memref.load %arg2[%c113] : memref<150xf32, #tpu.memory_space<smem>>
    %c0_452 = arith.constant 0 : index
    %c113_453 = arith.constant 113 : index
    %c0_454 = arith.constant 0 : index
    %c0_455 = arith.constant 0 : index
    %675 = vector.load %arg1[%c0_452, %c113_453, %c0_454, %c0_455] : memref<1x150x7x6xf32, #tpu.memory_space<vmem>>, vector<1x1x7x6xf32>
    %676 = vector.shape_cast %675 : vector<1x1x7x6xf32> to vector<7x6xf32>
    %677 = vector.broadcast %674 : f32 to vector<7x6xf32>
    %678 = arith.mulf %677, %676 : vector<7x6xf32>
    %679 = arith.addf %655, %678 : vector<7x6xf32>
    %c114 = arith.constant 114 : index
    %680 = memref.load %arg2[%c114] : memref<150xf32, #tpu.memory_space<smem>>
    %c0_456 = arith.constant 0 : index
    %c114_457 = arith.constant 114 : index
    %c0_458 = arith.constant 0 : index
    %c0_459 = arith.constant 0 : index
    %681 = vector.load %arg1[%c0_456, %c114_457, %c0_458, %c0_459] : memref<1x150x7x6xf32, #tpu.memory_space<vmem>>, vector<1x1x7x6xf32>
    %682 = vector.shape_cast %681 : vector<1x1x7x6xf32> to vector<7x6xf32>
    %683 = vector.broadcast %680 : f32 to vector<7x6xf32>
    %684 = arith.mulf %683, %682 : vector<7x6xf32>
    %685 = arith.addf %661, %684 : vector<7x6xf32>
    %c115 = arith.constant 115 : index
    %686 = memref.load %arg2[%c115] : memref<150xf32, #tpu.memory_space<smem>>
    %c0_460 = arith.constant 0 : index
    %c115_461 = arith.constant 115 : index
    %c0_462 = arith.constant 0 : index
    %c0_463 = arith.constant 0 : index
    %687 = vector.load %arg1[%c0_460, %c115_461, %c0_462, %c0_463] : memref<1x150x7x6xf32, #tpu.memory_space<vmem>>, vector<1x1x7x6xf32>
    %688 = vector.shape_cast %687 : vector<1x1x7x6xf32> to vector<7x6xf32>
    %689 = vector.broadcast %686 : f32 to vector<7x6xf32>
    %690 = arith.mulf %689, %688 : vector<7x6xf32>
    %691 = arith.addf %667, %690 : vector<7x6xf32>
    %c116 = arith.constant 116 : index
    %692 = memref.load %arg2[%c116] : memref<150xf32, #tpu.memory_space<smem>>
    %c0_464 = arith.constant 0 : index
    %c116_465 = arith.constant 116 : index
    %c0_466 = arith.constant 0 : index
    %c0_467 = arith.constant 0 : index
    %693 = vector.load %arg1[%c0_464, %c116_465, %c0_466, %c0_467] : memref<1x150x7x6xf32, #tpu.memory_space<vmem>>, vector<1x1x7x6xf32>
    %694 = vector.shape_cast %693 : vector<1x1x7x6xf32> to vector<7x6xf32>
    %695 = vector.broadcast %692 : f32 to vector<7x6xf32>
    %696 = arith.mulf %695, %694 : vector<7x6xf32>
    %697 = arith.addf %673, %696 : vector<7x6xf32>
    %c117 = arith.constant 117 : index
    %698 = memref.load %arg2[%c117] : memref<150xf32, #tpu.memory_space<smem>>
    %c0_468 = arith.constant 0 : index
    %c117_469 = arith.constant 117 : index
    %c0_470 = arith.constant 0 : index
    %c0_471 = arith.constant 0 : index
    %699 = vector.load %arg1[%c0_468, %c117_469, %c0_470, %c0_471] : memref<1x150x7x6xf32, #tpu.memory_space<vmem>>, vector<1x1x7x6xf32>
    %700 = vector.shape_cast %699 : vector<1x1x7x6xf32> to vector<7x6xf32>
    %701 = vector.broadcast %698 : f32 to vector<7x6xf32>
    %702 = arith.mulf %701, %700 : vector<7x6xf32>
    %703 = arith.addf %679, %702 : vector<7x6xf32>
    %c118 = arith.constant 118 : index
    %704 = memref.load %arg2[%c118] : memref<150xf32, #tpu.memory_space<smem>>
    %c0_472 = arith.constant 0 : index
    %c118_473 = arith.constant 118 : index
    %c0_474 = arith.constant 0 : index
    %c0_475 = arith.constant 0 : index
    %705 = vector.load %arg1[%c0_472, %c118_473, %c0_474, %c0_475] : memref<1x150x7x6xf32, #tpu.memory_space<vmem>>, vector<1x1x7x6xf32>
    %706 = vector.shape_cast %705 : vector<1x1x7x6xf32> to vector<7x6xf32>
    %707 = vector.broadcast %704 : f32 to vector<7x6xf32>
    %708 = arith.mulf %707, %706 : vector<7x6xf32>
    %709 = arith.addf %685, %708 : vector<7x6xf32>
    %c119 = arith.constant 119 : index
    %710 = memref.load %arg2[%c119] : memref<150xf32, #tpu.memory_space<smem>>
    %c0_476 = arith.constant 0 : index
    %c119_477 = arith.constant 119 : index
    %c0_478 = arith.constant 0 : index
    %c0_479 = arith.constant 0 : index
    %711 = vector.load %arg1[%c0_476, %c119_477, %c0_478, %c0_479] : memref<1x150x7x6xf32, #tpu.memory_space<vmem>>, vector<1x1x7x6xf32>
    %712 = vector.shape_cast %711 : vector<1x1x7x6xf32> to vector<7x6xf32>
    %713 = vector.broadcast %710 : f32 to vector<7x6xf32>
    %714 = arith.mulf %713, %712 : vector<7x6xf32>
    %715 = arith.addf %691, %714 : vector<7x6xf32>
    %c120 = arith.constant 120 : index
    %716 = memref.load %arg2[%c120] : memref<150xf32, #tpu.memory_space<smem>>
    %c0_480 = arith.constant 0 : index
    %c120_481 = arith.constant 120 : index
    %c0_482 = arith.constant 0 : index
    %c0_483 = arith.constant 0 : index
    %717 = vector.load %arg1[%c0_480, %c120_481, %c0_482, %c0_483] : memref<1x150x7x6xf32, #tpu.memory_space<vmem>>, vector<1x1x7x6xf32>
    %718 = vector.shape_cast %717 : vector<1x1x7x6xf32> to vector<7x6xf32>
    %719 = vector.broadcast %716 : f32 to vector<7x6xf32>
    %720 = arith.mulf %719, %718 : vector<7x6xf32>
    %721 = arith.addf %697, %720 : vector<7x6xf32>
    %c121 = arith.constant 121 : index
    %722 = memref.load %arg2[%c121] : memref<150xf32, #tpu.memory_space<smem>>
    %c0_484 = arith.constant 0 : index
    %c121_485 = arith.constant 121 : index
    %c0_486 = arith.constant 0 : index
    %c0_487 = arith.constant 0 : index
    %723 = vector.load %arg1[%c0_484, %c121_485, %c0_486, %c0_487] : memref<1x150x7x6xf32, #tpu.memory_space<vmem>>, vector<1x1x7x6xf32>
    %724 = vector.shape_cast %723 : vector<1x1x7x6xf32> to vector<7x6xf32>
    %725 = vector.broadcast %722 : f32 to vector<7x6xf32>
    %726 = arith.mulf %725, %724 : vector<7x6xf32>
    %727 = arith.addf %703, %726 : vector<7x6xf32>
    %c122 = arith.constant 122 : index
    %728 = memref.load %arg2[%c122] : memref<150xf32, #tpu.memory_space<smem>>
    %c0_488 = arith.constant 0 : index
    %c122_489 = arith.constant 122 : index
    %c0_490 = arith.constant 0 : index
    %c0_491 = arith.constant 0 : index
    %729 = vector.load %arg1[%c0_488, %c122_489, %c0_490, %c0_491] : memref<1x150x7x6xf32, #tpu.memory_space<vmem>>, vector<1x1x7x6xf32>
    %730 = vector.shape_cast %729 : vector<1x1x7x6xf32> to vector<7x6xf32>
    %731 = vector.broadcast %728 : f32 to vector<7x6xf32>
    %732 = arith.mulf %731, %730 : vector<7x6xf32>
    %733 = arith.addf %709, %732 : vector<7x6xf32>
    %c123 = arith.constant 123 : index
    %734 = memref.load %arg2[%c123] : memref<150xf32, #tpu.memory_space<smem>>
    %c0_492 = arith.constant 0 : index
    %c123_493 = arith.constant 123 : index
    %c0_494 = arith.constant 0 : index
    %c0_495 = arith.constant 0 : index
    %735 = vector.load %arg1[%c0_492, %c123_493, %c0_494, %c0_495] : memref<1x150x7x6xf32, #tpu.memory_space<vmem>>, vector<1x1x7x6xf32>
    %736 = vector.shape_cast %735 : vector<1x1x7x6xf32> to vector<7x6xf32>
    %737 = vector.broadcast %734 : f32 to vector<7x6xf32>
    %738 = arith.mulf %737, %736 : vector<7x6xf32>
    %739 = arith.addf %715, %738 : vector<7x6xf32>
    %c124 = arith.constant 124 : index
    %740 = memref.load %arg2[%c124] : memref<150xf32, #tpu.memory_space<smem>>
    %c0_496 = arith.constant 0 : index
    %c124_497 = arith.constant 124 : index
    %c0_498 = arith.constant 0 : index
    %c0_499 = arith.constant 0 : index
    %741 = vector.load %arg1[%c0_496, %c124_497, %c0_498, %c0_499] : memref<1x150x7x6xf32, #tpu.memory_space<vmem>>, vector<1x1x7x6xf32>
    %742 = vector.shape_cast %741 : vector<1x1x7x6xf32> to vector<7x6xf32>
    %743 = vector.broadcast %740 : f32 to vector<7x6xf32>
    %744 = arith.mulf %743, %742 : vector<7x6xf32>
    %745 = arith.addf %721, %744 : vector<7x6xf32>
    %c125 = arith.constant 125 : index
    %746 = memref.load %arg2[%c125] : memref<150xf32, #tpu.memory_space<smem>>
    %c0_500 = arith.constant 0 : index
    %c125_501 = arith.constant 125 : index
    %c0_502 = arith.constant 0 : index
    %c0_503 = arith.constant 0 : index
    %747 = vector.load %arg1[%c0_500, %c125_501, %c0_502, %c0_503] : memref<1x150x7x6xf32, #tpu.memory_space<vmem>>, vector<1x1x7x6xf32>
    %748 = vector.shape_cast %747 : vector<1x1x7x6xf32> to vector<7x6xf32>
    %749 = vector.broadcast %746 : f32 to vector<7x6xf32>
    %750 = arith.mulf %749, %748 : vector<7x6xf32>
    %751 = arith.addf %727, %750 : vector<7x6xf32>
    %c126 = arith.constant 126 : index
    %752 = memref.load %arg2[%c126] : memref<150xf32, #tpu.memory_space<smem>>
    %c0_504 = arith.constant 0 : index
    %c126_505 = arith.constant 126 : index
    %c0_506 = arith.constant 0 : index
    %c0_507 = arith.constant 0 : index
    %753 = vector.load %arg1[%c0_504, %c126_505, %c0_506, %c0_507] : memref<1x150x7x6xf32, #tpu.memory_space<vmem>>, vector<1x1x7x6xf32>
    %754 = vector.shape_cast %753 : vector<1x1x7x6xf32> to vector<7x6xf32>
    %755 = vector.broadcast %752 : f32 to vector<7x6xf32>
    %756 = arith.mulf %755, %754 : vector<7x6xf32>
    %757 = arith.addf %733, %756 : vector<7x6xf32>
    %c127 = arith.constant 127 : index
    %758 = memref.load %arg2[%c127] : memref<150xf32, #tpu.memory_space<smem>>
    %c0_508 = arith.constant 0 : index
    %c127_509 = arith.constant 127 : index
    %c0_510 = arith.constant 0 : index
    %c0_511 = arith.constant 0 : index
    %759 = vector.load %arg1[%c0_508, %c127_509, %c0_510, %c0_511] : memref<1x150x7x6xf32, #tpu.memory_space<vmem>>, vector<1x1x7x6xf32>
    %760 = vector.shape_cast %759 : vector<1x1x7x6xf32> to vector<7x6xf32>
    %761 = vector.broadcast %758 : f32 to vector<7x6xf32>
    %762 = arith.mulf %761, %760 : vector<7x6xf32>
    %763 = arith.addf %739, %762 : vector<7x6xf32>
    %c128 = arith.constant 128 : index
    %764 = memref.load %arg2[%c128] : memref<150xf32, #tpu.memory_space<smem>>
    %c0_512 = arith.constant 0 : index
    %c128_513 = arith.constant 128 : index
    %c0_514 = arith.constant 0 : index
    %c0_515 = arith.constant 0 : index
    %765 = vector.load %arg1[%c0_512, %c128_513, %c0_514, %c0_515] : memref<1x150x7x6xf32, #tpu.memory_space<vmem>>, vector<1x1x7x6xf32>
    %766 = vector.shape_cast %765 : vector<1x1x7x6xf32> to vector<7x6xf32>
    %767 = vector.broadcast %764 : f32 to vector<7x6xf32>
    %768 = arith.mulf %767, %766 : vector<7x6xf32>
    %769 = arith.addf %745, %768 : vector<7x6xf32>
    %c129 = arith.constant 129 : index
    %770 = memref.load %arg2[%c129] : memref<150xf32, #tpu.memory_space<smem>>
    %c0_516 = arith.constant 0 : index
    %c129_517 = arith.constant 129 : index
    %c0_518 = arith.constant 0 : index
    %c0_519 = arith.constant 0 : index
    %771 = vector.load %arg1[%c0_516, %c129_517, %c0_518, %c0_519] : memref<1x150x7x6xf32, #tpu.memory_space<vmem>>, vector<1x1x7x6xf32>
    %772 = vector.shape_cast %771 : vector<1x1x7x6xf32> to vector<7x6xf32>
    %773 = vector.broadcast %770 : f32 to vector<7x6xf32>
    %774 = arith.mulf %773, %772 : vector<7x6xf32>
    %775 = arith.addf %751, %774 : vector<7x6xf32>
    %c130 = arith.constant 130 : index
    %776 = memref.load %arg2[%c130] : memref<150xf32, #tpu.memory_space<smem>>
    %c0_520 = arith.constant 0 : index
    %c130_521 = arith.constant 130 : index
    %c0_522 = arith.constant 0 : index
    %c0_523 = arith.constant 0 : index
    %777 = vector.load %arg1[%c0_520, %c130_521, %c0_522, %c0_523] : memref<1x150x7x6xf32, #tpu.memory_space<vmem>>, vector<1x1x7x6xf32>
    %778 = vector.shape_cast %777 : vector<1x1x7x6xf32> to vector<7x6xf32>
    %779 = vector.broadcast %776 : f32 to vector<7x6xf32>
    %780 = arith.mulf %779, %778 : vector<7x6xf32>
    %781 = arith.addf %757, %780 : vector<7x6xf32>
    %c131 = arith.constant 131 : index
    %782 = memref.load %arg2[%c131] : memref<150xf32, #tpu.memory_space<smem>>
    %c0_524 = arith.constant 0 : index
    %c131_525 = arith.constant 131 : index
    %c0_526 = arith.constant 0 : index
    %c0_527 = arith.constant 0 : index
    %783 = vector.load %arg1[%c0_524, %c131_525, %c0_526, %c0_527] : memref<1x150x7x6xf32, #tpu.memory_space<vmem>>, vector<1x1x7x6xf32>
    %784 = vector.shape_cast %783 : vector<1x1x7x6xf32> to vector<7x6xf32>
    %785 = vector.broadcast %782 : f32 to vector<7x6xf32>
    %786 = arith.mulf %785, %784 : vector<7x6xf32>
    %787 = arith.addf %763, %786 : vector<7x6xf32>
    %c132 = arith.constant 132 : index
    %788 = memref.load %arg2[%c132] : memref<150xf32, #tpu.memory_space<smem>>
    %c0_528 = arith.constant 0 : index
    %c132_529 = arith.constant 132 : index
    %c0_530 = arith.constant 0 : index
    %c0_531 = arith.constant 0 : index
    %789 = vector.load %arg1[%c0_528, %c132_529, %c0_530, %c0_531] : memref<1x150x7x6xf32, #tpu.memory_space<vmem>>, vector<1x1x7x6xf32>
    %790 = vector.shape_cast %789 : vector<1x1x7x6xf32> to vector<7x6xf32>
    %791 = vector.broadcast %788 : f32 to vector<7x6xf32>
    %792 = arith.mulf %791, %790 : vector<7x6xf32>
    %793 = arith.addf %769, %792 : vector<7x6xf32>
    %c133 = arith.constant 133 : index
    %794 = memref.load %arg2[%c133] : memref<150xf32, #tpu.memory_space<smem>>
    %c0_532 = arith.constant 0 : index
    %c133_533 = arith.constant 133 : index
    %c0_534 = arith.constant 0 : index
    %c0_535 = arith.constant 0 : index
    %795 = vector.load %arg1[%c0_532, %c133_533, %c0_534, %c0_535] : memref<1x150x7x6xf32, #tpu.memory_space<vmem>>, vector<1x1x7x6xf32>
    %796 = vector.shape_cast %795 : vector<1x1x7x6xf32> to vector<7x6xf32>
    %797 = vector.broadcast %794 : f32 to vector<7x6xf32>
    %798 = arith.mulf %797, %796 : vector<7x6xf32>
    %799 = arith.addf %775, %798 : vector<7x6xf32>
    %c134 = arith.constant 134 : index
    %800 = memref.load %arg2[%c134] : memref<150xf32, #tpu.memory_space<smem>>
    %c0_536 = arith.constant 0 : index
    %c134_537 = arith.constant 134 : index
    %c0_538 = arith.constant 0 : index
    %c0_539 = arith.constant 0 : index
    %801 = vector.load %arg1[%c0_536, %c134_537, %c0_538, %c0_539] : memref<1x150x7x6xf32, #tpu.memory_space<vmem>>, vector<1x1x7x6xf32>
    %802 = vector.shape_cast %801 : vector<1x1x7x6xf32> to vector<7x6xf32>
    %803 = vector.broadcast %800 : f32 to vector<7x6xf32>
    %804 = arith.mulf %803, %802 : vector<7x6xf32>
    %805 = arith.addf %781, %804 : vector<7x6xf32>
    %c135 = arith.constant 135 : index
    %806 = memref.load %arg2[%c135] : memref<150xf32, #tpu.memory_space<smem>>
    %c0_540 = arith.constant 0 : index
    %c135_541 = arith.constant 135 : index
    %c0_542 = arith.constant 0 : index
    %c0_543 = arith.constant 0 : index
    %807 = vector.load %arg1[%c0_540, %c135_541, %c0_542, %c0_543] : memref<1x150x7x6xf32, #tpu.memory_space<vmem>>, vector<1x1x7x6xf32>
    %808 = vector.shape_cast %807 : vector<1x1x7x6xf32> to vector<7x6xf32>
    %809 = vector.broadcast %806 : f32 to vector<7x6xf32>
    %810 = arith.mulf %809, %808 : vector<7x6xf32>
    %811 = arith.addf %787, %810 : vector<7x6xf32>
    %c136 = arith.constant 136 : index
    %812 = memref.load %arg2[%c136] : memref<150xf32, #tpu.memory_space<smem>>
    %c0_544 = arith.constant 0 : index
    %c136_545 = arith.constant 136 : index
    %c0_546 = arith.constant 0 : index
    %c0_547 = arith.constant 0 : index
    %813 = vector.load %arg1[%c0_544, %c136_545, %c0_546, %c0_547] : memref<1x150x7x6xf32, #tpu.memory_space<vmem>>, vector<1x1x7x6xf32>
    %814 = vector.shape_cast %813 : vector<1x1x7x6xf32> to vector<7x6xf32>
    %815 = vector.broadcast %812 : f32 to vector<7x6xf32>
    %816 = arith.mulf %815, %814 : vector<7x6xf32>
    %817 = arith.addf %793, %816 : vector<7x6xf32>
    %c137 = arith.constant 137 : index
    %818 = memref.load %arg2[%c137] : memref<150xf32, #tpu.memory_space<smem>>
    %c0_548 = arith.constant 0 : index
    %c137_549 = arith.constant 137 : index
    %c0_550 = arith.constant 0 : index
    %c0_551 = arith.constant 0 : index
    %819 = vector.load %arg1[%c0_548, %c137_549, %c0_550, %c0_551] : memref<1x150x7x6xf32, #tpu.memory_space<vmem>>, vector<1x1x7x6xf32>
    %820 = vector.shape_cast %819 : vector<1x1x7x6xf32> to vector<7x6xf32>
    %821 = vector.broadcast %818 : f32 to vector<7x6xf32>
    %822 = arith.mulf %821, %820 : vector<7x6xf32>
    %823 = arith.addf %799, %822 : vector<7x6xf32>
    %c138 = arith.constant 138 : index
    %824 = memref.load %arg2[%c138] : memref<150xf32, #tpu.memory_space<smem>>
    %c0_552 = arith.constant 0 : index
    %c138_553 = arith.constant 138 : index
    %c0_554 = arith.constant 0 : index
    %c0_555 = arith.constant 0 : index
    %825 = vector.load %arg1[%c0_552, %c138_553, %c0_554, %c0_555] : memref<1x150x7x6xf32, #tpu.memory_space<vmem>>, vector<1x1x7x6xf32>
    %826 = vector.shape_cast %825 : vector<1x1x7x6xf32> to vector<7x6xf32>
    %827 = vector.broadcast %824 : f32 to vector<7x6xf32>
    %828 = arith.mulf %827, %826 : vector<7x6xf32>
    %829 = arith.addf %805, %828 : vector<7x6xf32>
    %c139 = arith.constant 139 : index
    %830 = memref.load %arg2[%c139] : memref<150xf32, #tpu.memory_space<smem>>
    %c0_556 = arith.constant 0 : index
    %c139_557 = arith.constant 139 : index
    %c0_558 = arith.constant 0 : index
    %c0_559 = arith.constant 0 : index
    %831 = vector.load %arg1[%c0_556, %c139_557, %c0_558, %c0_559] : memref<1x150x7x6xf32, #tpu.memory_space<vmem>>, vector<1x1x7x6xf32>
    %832 = vector.shape_cast %831 : vector<1x1x7x6xf32> to vector<7x6xf32>
    %833 = vector.broadcast %830 : f32 to vector<7x6xf32>
    %834 = arith.mulf %833, %832 : vector<7x6xf32>
    %835 = arith.addf %811, %834 : vector<7x6xf32>
    %c140 = arith.constant 140 : index
    %836 = memref.load %arg2[%c140] : memref<150xf32, #tpu.memory_space<smem>>
    %c0_560 = arith.constant 0 : index
    %c140_561 = arith.constant 140 : index
    %c0_562 = arith.constant 0 : index
    %c0_563 = arith.constant 0 : index
    %837 = vector.load %arg1[%c0_560, %c140_561, %c0_562, %c0_563] : memref<1x150x7x6xf32, #tpu.memory_space<vmem>>, vector<1x1x7x6xf32>
    %838 = vector.shape_cast %837 : vector<1x1x7x6xf32> to vector<7x6xf32>
    %839 = vector.broadcast %836 : f32 to vector<7x6xf32>
    %840 = arith.mulf %839, %838 : vector<7x6xf32>
    %841 = arith.addf %817, %840 : vector<7x6xf32>
    %c141 = arith.constant 141 : index
    %842 = memref.load %arg2[%c141] : memref<150xf32, #tpu.memory_space<smem>>
    %c0_564 = arith.constant 0 : index
    %c141_565 = arith.constant 141 : index
    %c0_566 = arith.constant 0 : index
    %c0_567 = arith.constant 0 : index
    %843 = vector.load %arg1[%c0_564, %c141_565, %c0_566, %c0_567] : memref<1x150x7x6xf32, #tpu.memory_space<vmem>>, vector<1x1x7x6xf32>
    %844 = vector.shape_cast %843 : vector<1x1x7x6xf32> to vector<7x6xf32>
    %845 = vector.broadcast %842 : f32 to vector<7x6xf32>
    %846 = arith.mulf %845, %844 : vector<7x6xf32>
    %847 = arith.addf %823, %846 : vector<7x6xf32>
    %c142 = arith.constant 142 : index
    %848 = memref.load %arg2[%c142] : memref<150xf32, #tpu.memory_space<smem>>
    %c0_568 = arith.constant 0 : index
    %c142_569 = arith.constant 142 : index
    %c0_570 = arith.constant 0 : index
    %c0_571 = arith.constant 0 : index
    %849 = vector.load %arg1[%c0_568, %c142_569, %c0_570, %c0_571] : memref<1x150x7x6xf32, #tpu.memory_space<vmem>>, vector<1x1x7x6xf32>
    %850 = vector.shape_cast %849 : vector<1x1x7x6xf32> to vector<7x6xf32>
    %851 = vector.broadcast %848 : f32 to vector<7x6xf32>
    %852 = arith.mulf %851, %850 : vector<7x6xf32>
    %853 = arith.addf %829, %852 : vector<7x6xf32>
    %c143 = arith.constant 143 : index
    %854 = memref.load %arg2[%c143] : memref<150xf32, #tpu.memory_space<smem>>
    %c0_572 = arith.constant 0 : index
    %c143_573 = arith.constant 143 : index
    %c0_574 = arith.constant 0 : index
    %c0_575 = arith.constant 0 : index
    %855 = vector.load %arg1[%c0_572, %c143_573, %c0_574, %c0_575] : memref<1x150x7x6xf32, #tpu.memory_space<vmem>>, vector<1x1x7x6xf32>
    %856 = vector.shape_cast %855 : vector<1x1x7x6xf32> to vector<7x6xf32>
    %857 = vector.broadcast %854 : f32 to vector<7x6xf32>
    %858 = arith.mulf %857, %856 : vector<7x6xf32>
    %859 = arith.addf %835, %858 : vector<7x6xf32>
    %c144 = arith.constant 144 : index
    %860 = memref.load %arg2[%c144] : memref<150xf32, #tpu.memory_space<smem>>
    %c0_576 = arith.constant 0 : index
    %c144_577 = arith.constant 144 : index
    %c0_578 = arith.constant 0 : index
    %c0_579 = arith.constant 0 : index
    %861 = vector.load %arg1[%c0_576, %c144_577, %c0_578, %c0_579] : memref<1x150x7x6xf32, #tpu.memory_space<vmem>>, vector<1x1x7x6xf32>
    %862 = vector.shape_cast %861 : vector<1x1x7x6xf32> to vector<7x6xf32>
    %863 = vector.broadcast %860 : f32 to vector<7x6xf32>
    %864 = arith.mulf %863, %862 : vector<7x6xf32>
    %865 = arith.addf %841, %864 : vector<7x6xf32>
    %c145 = arith.constant 145 : index
    %866 = memref.load %arg2[%c145] : memref<150xf32, #tpu.memory_space<smem>>
    %c0_580 = arith.constant 0 : index
    %c145_581 = arith.constant 145 : index
    %c0_582 = arith.constant 0 : index
    %c0_583 = arith.constant 0 : index
    %867 = vector.load %arg1[%c0_580, %c145_581, %c0_582, %c0_583] : memref<1x150x7x6xf32, #tpu.memory_space<vmem>>, vector<1x1x7x6xf32>
    %868 = vector.shape_cast %867 : vector<1x1x7x6xf32> to vector<7x6xf32>
    %869 = vector.broadcast %866 : f32 to vector<7x6xf32>
    %870 = arith.mulf %869, %868 : vector<7x6xf32>
    %871 = arith.addf %847, %870 : vector<7x6xf32>
    %c146 = arith.constant 146 : index
    %872 = memref.load %arg2[%c146] : memref<150xf32, #tpu.memory_space<smem>>
    %c0_584 = arith.constant 0 : index
    %c146_585 = arith.constant 146 : index
    %c0_586 = arith.constant 0 : index
    %c0_587 = arith.constant 0 : index
    %873 = vector.load %arg1[%c0_584, %c146_585, %c0_586, %c0_587] : memref<1x150x7x6xf32, #tpu.memory_space<vmem>>, vector<1x1x7x6xf32>
    %874 = vector.shape_cast %873 : vector<1x1x7x6xf32> to vector<7x6xf32>
    %875 = vector.broadcast %872 : f32 to vector<7x6xf32>
    %876 = arith.mulf %875, %874 : vector<7x6xf32>
    %877 = arith.addf %853, %876 : vector<7x6xf32>
    %c147 = arith.constant 147 : index
    %878 = memref.load %arg2[%c147] : memref<150xf32, #tpu.memory_space<smem>>
    %c0_588 = arith.constant 0 : index
    %c147_589 = arith.constant 147 : index
    %c0_590 = arith.constant 0 : index
    %c0_591 = arith.constant 0 : index
    %879 = vector.load %arg1[%c0_588, %c147_589, %c0_590, %c0_591] : memref<1x150x7x6xf32, #tpu.memory_space<vmem>>, vector<1x1x7x6xf32>
    %880 = vector.shape_cast %879 : vector<1x1x7x6xf32> to vector<7x6xf32>
    %881 = vector.broadcast %878 : f32 to vector<7x6xf32>
    %882 = arith.mulf %881, %880 : vector<7x6xf32>
    %883 = arith.addf %859, %882 : vector<7x6xf32>
    %c148 = arith.constant 148 : index
    %884 = memref.load %arg2[%c148] : memref<150xf32, #tpu.memory_space<smem>>
    %c0_592 = arith.constant 0 : index
    %c148_593 = arith.constant 148 : index
    %c0_594 = arith.constant 0 : index
    %c0_595 = arith.constant 0 : index
    %885 = vector.load %arg1[%c0_592, %c148_593, %c0_594, %c0_595] : memref<1x150x7x6xf32, #tpu.memory_space<vmem>>, vector<1x1x7x6xf32>
    %886 = vector.shape_cast %885 : vector<1x1x7x6xf32> to vector<7x6xf32>
    %887 = vector.broadcast %884 : f32 to vector<7x6xf32>
    %888 = arith.mulf %887, %886 : vector<7x6xf32>
    %889 = arith.addf %865, %888 : vector<7x6xf32>
    %c149 = arith.constant 149 : index
    %890 = memref.load %arg2[%c149] : memref<150xf32, #tpu.memory_space<smem>>
    %c0_596 = arith.constant 0 : index
    %c149_597 = arith.constant 149 : index
    %c0_598 = arith.constant 0 : index
    %c0_599 = arith.constant 0 : index
    %891 = vector.load %arg1[%c0_596, %c149_597, %c0_598, %c0_599] : memref<1x150x7x6xf32, #tpu.memory_space<vmem>>, vector<1x1x7x6xf32>
    %892 = vector.shape_cast %891 : vector<1x1x7x6xf32> to vector<7x6xf32>
    %893 = vector.broadcast %890 : f32 to vector<7x6xf32>
    %894 = arith.mulf %893, %892 : vector<7x6xf32>
    %895 = arith.addf %871, %894 : vector<7x6xf32>
    %896 = arith.addf %889, %895 : vector<7x6xf32>
    %897 = arith.addf %896, %877 : vector<7x6xf32>
    %898 = arith.addf %897, %883 : vector<7x6xf32>
    %c0_600 = arith.constant 0 : index
    %899 = memref.load %arg3[%c0_600] : memref<1xf32, #tpu.memory_space<smem>>
    %900 = vector.broadcast %899 : f32 to vector<7x6xf32>
    %901 = arith.addf %898, %900 : vector<7x6xf32>
    %cst = arith.constant 0.000000e+00 : f32
    %902 = vector.broadcast %cst : f32 to vector<7x6xf32>
    %903 = arith.cmpf ogt, %901, %902 : vector<7x6xf32>
    %cst_601 = arith.constant 0.619733512 : f32
    %904 = vector.broadcast %cst_601 : f32 to vector<7x6xf32>
    %905 = arith.mulf %901, %904 : vector<7x6xf32>
    %906 = arith.select %903, %901, %905 : vector<7x6xi1>, vector<7x6xf32>
    %c0_602 = arith.constant 0 : index
    %c0_603 = arith.constant 0 : index
    %c0_604 = arith.constant 0 : index
    %907 = vector.load %arg4[%c0_602, %c0_603, %c0_604] : memref<1x7x6xf32, #tpu.memory_space<vmem>>, vector<1x7x6xf32>
    %908 = vector.shape_cast %907 : vector<1x7x6xf32> to vector<7x6xf32>
    %909 = vector.shape_cast %906 : vector<7x6xf32> to vector<1x7x6xf32>
    tpu.vector_store %arg4[%c0_602, %c0_603, %c0_604], %909 {strides = array<i32>} : memref<1x7x6xf32, #tpu.memory_space<vmem>>, vector<1x7x6xf32>,
    return
  }
  func.func @transform_0(%arg0: i32) -> (i32, i32, i32, i32) {
    %c0_i32 = arith.constant 0 : i32
    %c0_i32_0 = arith.constant 0 : i32
    %c0_i32_1 = arith.constant 0 : i32
    %c0_i32_2 = arith.constant 0 : i32
    return %arg0, %c0_i32, %c0_i32_0, %c0_i32_1 : i32, i32, i32, i32
  }
  func.func @transform_1(%arg0: i32) -> i32 {
    %c0_i32 = arith.constant 0 : i32
    %c0_i32_0 = arith.constant 0 : i32
    return %c0_i32 : i32
  }
  func.func @transform_2(%arg0: i32) -> i32 {
    %c0_i32 = arith.constant 0 : i32
    %c0_i32_0 = arith.constant 0 : i32
    return %c0_i32 : i32
  }
  func.func @transform_3(%arg0: i32) -> (i32, i32, i32) {
    %c0_i32 = arith.constant 0 : i32
    %c0_i32_0 = arith.constant 0 : i32
    %c0_i32_1 = arith.constant 0 : i32
    return %arg0, %c0_i32, %c0_i32_0 : i32, i32, i32
  }
}

</mosaic_0001>

<llo_original>
// kernel: tpu_custom_call.1
$region0: #{tpu_custom_call.1}
  #allocation0 [shape = 'u32[]', space=smem, size = 0x4, offset = 0x4, fixed_abs, tag = 'smem constant byte address 0x4 - core index']
  #allocation1 [shape = 'u32[144,128]{1,0:T(1,128)}', space=vmem, size = 0x12000, scoped, tag = 'internal scratch']
  #allocation2 [shape = 'f32[1]{0:T(128)S(6)}', space=smem, size = 0x200, scoped, tag = 'scoped memory for tpu_custom_call.1']
  %s0 = inlined_call_operand.vmem [shape: f32[1,150,7,6], index: 0, kind: input, shape index: {}]
  %s1 = inlined_call_operand.vmem [shape: f32[150], index: 1, kind: input, shape index: {}]
  %s2 = inlined_call_operand.<no memory space> [shape: f32[1], index: 2, kind: input, shape index: {}]
  %s3 = inlined_call_operand.vmem [shape: f32[1,7,6], index: 3, kind: output, shape index: {}]
  %s4 = sld [smem:[#allocation0]]
  $region26: #{tpu_custom_call.1} parent=0
    _
  %s6 = ssub.s32 1, %s4
  %s7 = scalar_select 0, %s6, %s4
  %8 = sst [smem:[#allocation2]] %s2
  $region1: #{tpu_custom_call.1} parent=0
    #allocation3 [shape = 'u8[1024]{0}', space=smem, size = 0x400, scoped, tag = 'input window, operand 1, single buffered']
    #allocation4 [shape = 's32[1]{0}', space=sflag, size = 0x4, scoped, tag = 'scoped memory for tpu_custom_call.1']
    %9 = vsyncpa [#allocation4], 0
    // Predicated region
    $region2: #{tpu_custom_call.1} parent=1 // pred_check
      _
    $region3: #{tpu_custom_call.1} parent=1 // pred_check_branch
      %11 = sbr.rel (0) target = $region5
    $region4: #{tpu_custom_call.1} parent=1 // pred_region
      _
    $region5: #{tpu_custom_call.1} parent=1 // pred_fallthru
      _
    // Predicated region
    $region6: #{tpu_custom_call.1} parent=1 // pred_check
      _
    $region7: #{tpu_custom_call.1} parent=1 // pred_check_branch
      %13 = sbr.rel (0) target = $region9
    $region8: #{tpu_custom_call.1} parent=1 // pred_region
      %s15 = ssub.s32 32, 32
      %16 = vsyncadd [#allocation4], %s15
      %s18 = sshll.u32 %s1, 4
      %s19 = int_to_ptr.vmem [resolvable:$true] %s18
      %21 = dma.vmem_to_smem %s19, 32, [#allocation3], [#allocation4]
    $region9: #{tpu_custom_call.1} parent=1 // pred_fallthru
      _
    // Predicated region
    $region10: #{tpu_custom_call.1} parent=1 // pred_check
      _
    $region11: #{tpu_custom_call.1} parent=1 // pred_check_branch
      %23 = sbr.rel (0) target = $region13
    $region12: #{tpu_custom_call.1} parent=1 // pred_region
      _
    $region13: #{tpu_custom_call.1} parent=1 // pred_fallthru
      _
    // Predicated region
    $region14: #{tpu_custom_call.1} parent=1 // pred_check
      _
    $region15: #{tpu_custom_call.1} parent=1 // pred_check_branch
      %25 = sbr.rel (0) target = $region17
    $region16: #{tpu_custom_call.1} parent=1 // pred_region
      %26 = dma.done [#allocation4], 32
    $region17: #{tpu_custom_call.1} parent=1 // pred_fallthru
      _
    %27 = sfence
    %s28 = sld [smem:[#allocation3]]
    %v29 = vld [vmem:[%s0] sm:$0x7f]
    %v30 = vstv %s28
    %v31 = vmul.f32 %v30, %v29
    %s32 = sld [smem:[#allocation3 + $0x1]]
    %s33 = scalar_lea.vmem %s0, 8
    %v34 = vld [vmem:[%s33] sm:$0x7f]
    %v35 = vstv %s32
    %v36 = vmul.f32 %v35, %v34
    %s37 = sld [smem:[#allocation3 + $0x2]]
    %s38 = scalar_lea.vmem %s0, 16
    %v39 = vld [vmem:[%s38] sm:$0x7f]
    %v40 = vstv %s37
    %v41 = vmul.f32 %v40, %v39
    %s42 = sld [smem:[#allocation3 + $0x3]]
    %s43 = scalar_lea.vmem %s0, 24
    %v44 = vld [vmem:[%s43] sm:$0x7f]
    %v45 = vstv %s42
    %v46 = vmul.f32 %v45, %v44
    %s47 = sld [smem:[#allocation3 + $0x4]]
    %s48 = scalar_lea.vmem %s0, 32
    %v49 = vld [vmem:[%s48] sm:$0x7f]
    %v50 = vstv %s47
    %v51 = vmul.f32 %v50, %v49
    %v52 = vadd.f32 %v31, %v51
    %s53 = sld [smem:[#allocation3 + $0x5]]
    %s54 = scalar_lea.vmem %s0, 40
    %v55 = vld [vmem:[%s54] sm:$0x7f]
    %v56 = vstv %s53
    %v57 = vmul.f32 %v56, %v55
    %v58 = vadd.f32 %v36, %v57
    %s59 = sld [smem:[#allocation3 + $0x6]]
    %s60 = scalar_lea.vmem %s0, 48
    %v61 = vld [vmem:[%s60] sm:$0x7f]
    %v62 = vstv %s59
    %v63 = vmul.f32 %v62, %v61
    %v64 = vadd.f32 %v41, %v63
    %s65 = sld [smem:[#allocation3 + $0x7]]
    %s66 = scalar_lea.vmem %s0, 56
    %v67 = vld [vmem:[%s66] sm:$0x7f]
    %v68 = vstv %s65
    %v69 = vmul.f32 %v68, %v67
    %v70 = vadd.f32 %v46, %v69
    %s71 = sld [smem:[#allocation3 + $0x8]]
    %s72 = scalar_lea.vmem %s0, 64
    %v73 = vld [vmem:[%s72] sm:$0x7f]
    %v74 = vstv %s71
    %v75 = vmul.f32 %v74, %v73
    %v76 = vadd.f32 %v52, %v75
    %s77 = sld [smem:[#allocation3 + $0x9]]
    %s78 = scalar_lea.vmem %s0, 72
    %v79 = vld [vmem:[%s78] sm:$0x7f]
    %v80 = vstv %s77
    %v81 = vmul.f32 %v80, %v79
    %v82 = vadd.f32 %v58, %v81
    %s83 = sld [smem:[#allocation3 + $0xa]]
    %s84 = scalar_lea.vmem %s0, 80
    %v85 = vld [vmem:[%s84] sm:$0x7f]
    %v86 = vstv %s83
    %v87 = vmul.f32 %v86, %v85
    %v88 = vadd.f32 %v64, %v87
    %s89 = sld [smem:[#allocation3 + $0xb]]
    %s90 = scalar_lea.vmem %s0, 88
    %v91 = vld [vmem:[%s90] sm:$0x7f]
    %v92 = vstv %s89
    %v93 = vmul.f32 %v92, %v91
    %v94 = vadd.f32 %v70, %v93
    %s95 = sld [smem:[#allocation3 + $0xc]]
    %s96 = scalar_lea.vmem %s0, 96
    %v97 = vld [vmem:[%s96] sm:$0x7f]
    %v98 = vstv %s95
    %v99 = vmul.f32 %v98, %v97
    %v100 = vadd.f32 %v76, %v99
    %s101 = sld [smem:[#allocation3 + $0xd]]
    %s102 = scalar_lea.vmem %s0, 104
    %v103 = vld [vmem:[%s102] sm:$0x7f]
    %v104 = vstv %s101
    %v105 = vmul.f32 %v104, %v103
    %v106 = vadd.f32 %v82, %v105
    %s107 = sld [smem:[#allocation3 + $0xe]]
    %s108 = scalar_lea.vmem %s0, 112
    %v109 = vld [vmem:[%s108] sm:$0x7f]
    %v110 = vstv %s107
    %v111 = vmul.f32 %v110, %v109
    %v112 = vadd.f32 %v88, %v111
    %s113 = sld [smem:[#allocation3 + $0xf]]
    %s114 = scalar_lea.vmem %s0, 120
    %v115 = vld [vmem:[%s114] sm:$0x7f]
    %v116 = vstv %s113
    %v117 = vmul.f32 %v116, %v115
    %v118 = vadd.f32 %v94, %v117
    %s119 = sld [smem:[#allocation3 + $0x10]]
    %s120 = scalar_lea.vmem %s0, 128
    %v121 = vld [vmem:[%s120] sm:$0x7f]
    %v122 = vstv %s119
    %v123 = vmul.f32 %v122, %v121
    %v124 = vadd.f32 %v100, %v123
    %s125 = sld [smem:[#allocation3 + $0x11]]
    %s126 = scalar_lea.vmem %s0, 136
    %v127 = vld [vmem:[%s126] sm:$0x7f]
    %v128 = vstv %s125
    %v129 = vmul.f32 %v128, %v127
    %v130 = vadd.f32 %v106, %v129
    %s131 = sld [smem:[#allocation3 + $0x12]]
    %s132 = scalar_lea.vmem %s0, 144
    %v133 = vld [vmem:[%s132] sm:$0x7f]
    %v134 = vstv %s131
    %v135 = vmul.f32 %v134, %v133
    %v136 = vadd.f32 %v112, %v135
    %s137 = sld [smem:[#allocation3 + $0x13]]
    %s138 = scalar_lea.vmem %s0, 152
    %v139 = vld [vmem:[%s138] sm:$0x7f]
    %v140 = vstv %s137
    %v141 = vmul.f32 %v140, %v139
    %v142 = vadd.f32 %v118, %v141
    %s143 = sld [smem:[#allocation3 + $0x14]]
    %s144 = scalar_lea.vmem %s0, 160
    %v145 = vld [vmem:[%s144] sm:$0x7f]
    %v146 = vstv %s143
    %v147 = vmul.f32 %v146, %v145
    %v148 = vadd.f32 %v124, %v147
    %s149 = sld [smem:[#allocation3 + $0x15]]
    %s150 = scalar_lea.vmem %s0, 168
    %v151 = vld [vmem:[%s150] sm:$0x7f]
    %v152 = vstv %s149
    %v153 = vmul.f32 %v152, %v151
    %v154 = vadd.f32 %v130, %v153
    %s155 = sld [smem:[#allocation3 + $0x16]]
    %s156 = scalar_lea.vmem %s0, 176
    %v157 = vld [vmem:[%s156] sm:$0x7f]
    %v158 = vstv %s155
    %v159 = vmul.f32 %v158, %v157
    %v160 = vadd.f32 %v136, %v159
    %s161 = sld [smem:[#allocation3 + $0x17]]
    %s162 = scalar_lea.vmem %s0, 184
    %v163 = vld [vmem:[%s162] sm:$0x7f]
    %v164 = vstv %s161
    %v165 = vmul.f32 %v164, %v163
    %v166 = vadd.f32 %v142, %v165
    %s167 = sld [smem:[#allocation3 + $0x18]]
    %s168 = scalar_lea.vmem %s0, 192
    %v169 = vld [vmem:[%s168] sm:$0x7f]
    %v170 = vstv %s167
    %v171 = vmul.f32 %v170, %v169
    %v172 = vadd.f32 %v148, %v171
    %s173 = sld [smem:[#allocation3 + $0x19]]
    %s174 = scalar_lea.vmem %s0, 200
    %v175 = vld [vmem:[%s174] sm:$0x7f]
    %v176 = vstv %s173
    %v177 = vmul.f32 %v176, %v175
    %v178 = vadd.f32 %v154, %v177
    %s179 = sld [smem:[#allocation3 + $0x1a]]
    %s180 = scalar_lea.vmem %s0, 208
    %v181 = vld [vmem:[%s180] sm:$0x7f]
    %v182 = vstv %s179
    %v183 = vmul.f32 %v182, %v181
    %v184 = vadd.f32 %v160, %v183
    %s185 = sld [smem:[#allocation3 + $0x1b]]
    %s186 = scalar_lea.vmem %s0, 216
    %v187 = vld [vmem:[%s186] sm:$0x7f]
    %v188 = vstv %s185
    %v189 = vmul.f32 %v188, %v187
    %v190 = vadd.f32 %v166, %v189
    %s191 = sld [smem:[#allocation3 + $0x1c]]
    %s192 = scalar_lea.vmem %s0, 224
    %v193 = vld [vmem:[%s192] sm:$0x7f]
    %v194 = vstv %s191
    %v195 = vmul.f32 %v194, %v193
    %v196 = vadd.f32 %v172, %v195
    %s197 = sld [smem:[#allocation3 + $0x1d]]
    %s198 = scalar_lea.vmem %s0, 232
    %v199 = vld [vmem:[%s198] sm:$0x7f]
    %v200 = vstv %s197
    %v201 = vmul.f32 %v200, %v199
    %v202 = vadd.f32 %v178, %v201
    %s203 = sld [smem:[#allocation3 + $0x1e]]
    %s204 = scalar_lea.vmem %s0, 240
    %v205 = vld [vmem:[%s204] sm:$0x7f]
    %v206 = vstv %s203
    %v207 = vmul.f32 %v206, %v205
    %v208 = vadd.f32 %v184, %v207
    %s209 = sld [smem:[#allocation3 + $0x1f]]
    %s210 = scalar_lea.vmem %s0, 248
    %v211 = vld [vmem:[%s210] sm:$0x7f]
    %v212 = vstv %s209
    %v213 = vmul.f32 %v212, %v211
    %v214 = vadd.f32 %v190, %v213
    %s215 = sld [smem:[#allocation3 + $0x20]]
    %s216 = scalar_lea.vmem %s0, 256
    %v217 = vld [vmem:[%s216] sm:$0x7f]
    %v218 = vstv %s215
    %v219 = vmul.f32 %v218, %v217
    %v220 = vadd.f32 %v196, %v219
    %s221 = sld [smem:[#allocation3 + $0x21]]
    %s222 = scalar_lea.vmem %s0, 264
    %v223 = vld [vmem:[%s222] sm:$0x7f]
    %v224 = vstv %s221
    %v225 = vmul.f32 %v224, %v223
    %v226 = vadd.f32 %v202, %v225
    %s227 = sld [smem:[#allocation3 + $0x22]]
    %s228 = scalar_lea.vmem %s0, 272
    %v229 = vld [vmem:[%s228] sm:$0x7f]
    %v230 = vstv %s227
    %v231 = vmul.f32 %v230, %v229
    %v232 = vadd.f32 %v208, %v231
    %s233 = sld [smem:[#allocation3 + $0x23]]
    %s234 = scalar_lea.vmem %s0, 280
    %v235 = vld [vmem:[%s234] sm:$0x7f]
    %v236 = vstv %s233
    %v237 = vmul.f32 %v236, %v235
    %v238 = vadd.f32 %v214, %v237
    %s239 = sld [smem:[#allocation3 + $0x24]]
    %s240 = scalar_lea.vmem %s0, 288
    %v241 = vld [vmem:[%s240] sm:$0x7f]
    %v242 = vstv %s239
    %v243 = vmul.f32 %v242, %v241
    %v244 = vadd.f32 %v220, %v243
    %s245 = sld [smem:[#allocation3 + $0x25]]
    %s246 = scalar_lea.vmem %s0, 296
    %v247 = vld [vmem:[%s246] sm:$0x7f]
    %v248 = vstv %s245
    %v249 = vmul.f32 %v248, %v247
    %v250 = vadd.f32 %v226, %v249
    %s251 = sld [smem:[#allocation3 + $0x26]]
    %s252 = scalar_lea.vmem %s0, 304
    %v253 = vld [vmem:[%s252] sm:$0x7f]
    %v254 = vstv %s251
    %v255 = vmul.f32 %v254, %v253
    %v256 = vadd.f32 %v232, %v255
    %s257 = sld [smem:[#allocation3 + $0x27]]
    %s258 = scalar_lea.vmem %s0, 312
    %v259 = vld [vmem:[%s258] sm:$0x7f]
    %v260 = vstv %s257
    %v261 = vmul.f32 %v260, %v259
    %v262 = vadd.f32 %v238, %v261
    %s263 = sld [smem:[#allocation3 + $0x28]]
    %s264 = scalar_lea.vmem %s0, 320
    %v265 = vld [vmem:[%s264] sm:$0x7f]
    %v266 = vstv %s263
    %v267 = vmul.f32 %v266, %v265
    %v268 = vadd.f32 %v244, %v267
    %s269 = sld [smem:[#allocation3 + $0x29]]
    %s270 = scalar_lea.vmem %s0, 328
    %v271 = vld [vmem:[%s270] sm:$0x7f]
    %v272 = vstv %s269
    %v273 = vmul.f32 %v272, %v271
    %v274 = vadd.f32 %v250, %v273
    %s275 = sld [smem:[#allocation3 + $0x2a]]
    %s276 = scalar_lea.vmem %s0, 336
    %v277 = vld [vmem:[%s276] sm:$0x7f]
    %v278 = vstv %s275
    %v279 = vmul.f32 %v278, %v277
    %v280 = vadd.f32 %v256, %v279
    %s281 = sld [smem:[#allocation3 + $0x2b]]
    %s282 = scalar_lea.vmem %s0, 344
    %v283 = vld [vmem:[%s282] sm:$0x7f]
    %v284 = vstv %s281
    %v285 = vmul.f32 %v284, %v283
    %v286 = vadd.f32 %v262, %v285
    %s287 = sld [smem:[#allocation3 + $0x2c]]
    %s288 = scalar_lea.vmem %s0, 352
    %v289 = vld [vmem:[%s288] sm:$0x7f]
    %v290 = vstv %s287
    %v291 = vmul.f32 %v290, %v289
    %v292 = vadd.f32 %v268, %v291
    %s293 = sld [smem:[#allocation3 + $0x2d]]
    %s294 = scalar_lea.vmem %s0, 360
    %v295 = vld [vmem:[%s294] sm:$0x7f]
    %v296 = vstv %s293
    %v297 = vmul.f32 %v296, %v295
    %v298 = vadd.f32 %v274, %v297
    %s299 = sld [smem:[#allocation3 + $0x2e]]
    %s300 = scalar_lea.vmem %s0, 368
    %v301 = vld [vmem:[%s300] sm:$0x7f]
    %v302 = vstv %s299
    %v303 = vmul.f32 %v302, %v301
    %v304 = vadd.f32 %v280, %v303
    %s305 = sld [smem:[#allocation3 + $0x2f]]
    %s306 = scalar_lea.vmem %s0, 376
    %v307 = vld [vmem:[%s306] sm:$0x7f]
    %v308 = vstv %s305
    %v309 = vmul.f32 %v308, %v307
    %v310 = vadd.f32 %v286, %v309
    %s311 = sld [smem:[#allocation3 + $0x30]]
    %s312 = scalar_lea.vmem %s0, 384
    %v313 = vld [vmem:[%s312] sm:$0x7f]
    %v314 = vstv %s311
    %v315 = vmul.f32 %v314, %v313
    %v316 = vadd.f32 %v292, %v315
    %s317 = sld [smem:[#allocation3 + $0x31]]
    %s318 = scalar_lea.vmem %s0, 392
    %v319 = vld [vmem:[%s318] sm:$0x7f]
    %v320 = vstv %s317
    %v321 = vmul.f32 %v320, %v319
    %v322 = vadd.f32 %v298, %v321
    %s323 = sld [smem:[#allocation3 + $0x32]]
    %s324 = scalar_lea.vmem %s0, 400
    %v325 = vld [vmem:[%s324] sm:$0x7f]
    %v326 = vstv %s323
    %v327 = vmul.f32 %v326, %v325
    %v328 = vadd.f32 %v304, %v327
    %s329 = sld [smem:[#allocation3 + $0x33]]
    %s330 = scalar_lea.vmem %s0, 408
    %v331 = vld [vmem:[%s330] sm:$0x7f]
    %v332 = vstv %s329
    %v333 = vmul.f32 %v332, %v331
    %v334 = vadd.f32 %v310, %v333
    %s335 = sld [smem:[#allocation3 + $0x34]]
    %s336 = scalar_lea.vmem %s0, 416
    %v337 = vld [vmem:[%s336] sm:$0x7f]
    %v338 = vstv %s335
    %v339 = vmul.f32 %v338, %v337
    %v340 = vadd.f32 %v316, %v339
    %s341 = sld [smem:[#allocation3 + $0x35]]
    %s342 = scalar_lea.vmem %s0, 424
    %v343 = vld [vmem:[%s342] sm:$0x7f]
    %v344 = vstv %s341
    %v345 = vmul.f32 %v344, %v343
    %v346 = vadd.f32 %v322, %v345
    %s347 = sld [smem:[#allocation3 + $0x36]]
    %s348 = scalar_lea.vmem %s0, 432
    %v349 = vld [vmem:[%s348] sm:$0x7f]
    %v350 = vstv %s347
    %v351 = vmul.f32 %v350, %v349
    %v352 = vadd.f32 %v328, %v351
    %s353 = sld [smem:[#allocation3 + $0x37]]
    %s354 = scalar_lea.vmem %s0, 440
    %v355 = vld [vmem:[%s354] sm:$0x7f]
    %v356 = vstv %s353
    %v357 = vmul.f32 %v356, %v355
    %v358 = vadd.f32 %v334, %v357
    %s359 = sld [smem:[#allocation3 + $0x38]]
    %s360 = scalar_lea.vmem %s0, 448
    %v361 = vld [vmem:[%s360] sm:$0x7f]
    %v362 = vstv %s359
    %v363 = vmul.f32 %v362, %v361
    %v364 = vadd.f32 %v340, %v363
    %s365 = sld [smem:[#allocation3 + $0x39]]
    %s366 = scalar_lea.vmem %s0, 456
    %v367 = vld [vmem:[%s366] sm:$0x7f]
    %v368 = vstv %s365
    %v369 = vmul.f32 %v368, %v367
    %v370 = vadd.f32 %v346, %v369
    %s371 = sld [smem:[#allocation3 + $0x3a]]
    %s372 = scalar_lea.vmem %s0, 464
    %v373 = vld [vmem:[%s372] sm:$0x7f]
    %v374 = vstv %s371
    %v375 = vmul.f32 %v374, %v373
    %v376 = vadd.f32 %v352, %v375
    %s377 = sld [smem:[#allocation3 + $0x3b]]
    %s378 = scalar_lea.vmem %s0, 472
    %v379 = vld [vmem:[%s378] sm:$0x7f]
    %v380 = vstv %s377
    %v381 = vmul.f32 %v380, %v379
    %v382 = vadd.f32 %v358, %v381
    %s383 = sld [smem:[#allocation3 + $0x3c]]
    %s384 = scalar_lea.vmem %s0, 480
    %v385 = vld [vmem:[%s384] sm:$0x7f]
    %v386 = vstv %s383
    %v387 = vmul.f32 %v386, %v385
    %v388 = vadd.f32 %v364, %v387
    %s389 = sld [smem:[#allocation3 + $0x3d]]
    %s390 = scalar_lea.vmem %s0, 488
    %v391 = vld [vmem:[%s390] sm:$0x7f]
    %v392 = vstv %s389
    %v393 = vmul.f32 %v392, %v391
    %v394 = vadd.f32 %v370, %v393
    %s395 = sld [smem:[#allocation3 + $0x3e]]
    %s396 = scalar_lea.vmem %s0, 496
    %v397 = vld [vmem:[%s396] sm:$0x7f]
    %v398 = vstv %s395
    %v399 = vmul.f32 %v398, %v397
    %v400 = vadd.f32 %v376, %v399
    %s401 = sld [smem:[#allocation3 + $0x3f]]
    %s402 = scalar_lea.vmem %s0, 504
    %v403 = vld [vmem:[%s402] sm:$0x7f]
    %v404 = vstv %s401
    %v405 = vmul.f32 %v404, %v403
    %v406 = vadd.f32 %v382, %v405
    %s407 = sld [smem:[#allocation3 + $0x40]]
    %s408 = scalar_lea.vmem %s0, 512
    %v409 = vld [vmem:[%s408] sm:$0x7f]
    %v410 = vstv %s407
    %v411 = vmul.f32 %v410, %v409
    %v412 = vadd.f32 %v388, %v411
    %s413 = sld [smem:[#allocation3 + $0x41]]
    %s414 = scalar_lea.vmem %s0, 520
    %v415 = vld [vmem:[%s414] sm:$0x7f]
    %v416 = vstv %s413
    %v417 = vmul.f32 %v416, %v415
    %v418 = vadd.f32 %v394, %v417
    %s419 = sld [smem:[#allocation3 + $0x42]]
    %s420 = scalar_lea.vmem %s0, 528
    %v421 = vld [vmem:[%s420] sm:$0x7f]
    %v422 = vstv %s419
    %v423 = vmul.f32 %v422, %v421
    %v424 = vadd.f32 %v400, %v423
    %s425 = sld [smem:[#allocation3 + $0x43]]
    %s426 = scalar_lea.vmem %s0, 536
    %v427 = vld [vmem:[%s426] sm:$0x7f]
    %v428 = vstv %s425
    %v429 = vmul.f32 %v428, %v427
    %v430 = vadd.f32 %v406, %v429
    %s431 = sld [smem:[#allocation3 + $0x44]]
    %s432 = scalar_lea.vmem %s0, 544
    %v433 = vld [vmem:[%s432] sm:$0x7f]
    %v434 = vstv %s431
    %v435 = vmul.f32 %v434, %v433
    %v436 = vadd.f32 %v412, %v435
    %s437 = sld [smem:[#allocation3 + $0x45]]
    %s438 = scalar_lea.vmem %s0, 552
    %v439 = vld [vmem:[%s438] sm:$0x7f]
    %v440 = vstv %s437
    %v441 = vmul.f32 %v440, %v439
    %v442 = vadd.f32 %v418, %v441
    %s443 = sld [smem:[#allocation3 + $0x46]]
    %s444 = scalar_lea.vmem %s0, 560
    %v445 = vld [vmem:[%s444] sm:$0x7f]
    %v446 = vstv %s443
    %v447 = vmul.f32 %v446, %v445
    %v448 = vadd.f32 %v424, %v447
    %s449 = sld [smem:[#allocation3 + $0x47]]
    %s450 = scalar_lea.vmem %s0, 568
    %v451 = vld [vmem:[%s450] sm:$0x7f]
    %v452 = vstv %s449
    %v453 = vmul.f32 %v452, %v451
    %v454 = vadd.f32 %v430, %v453
    %s455 = sld [smem:[#allocation3 + $0x48]]
    %s456 = scalar_lea.vmem %s0, 576
    %v457 = vld [vmem:[%s456] sm:$0x7f]
    %v458 = vstv %s455
    %v459 = vmul.f32 %v458, %v457
    %v460 = vadd.f32 %v436, %v459
    %s461 = sld [smem:[#allocation3 + $0x49]]
    %s462 = scalar_lea.vmem %s0, 584
    %v463 = vld [vmem:[%s462] sm:$0x7f]
    %v464 = vstv %s461
    %v465 = vmul.f32 %v464, %v463
    %v466 = vadd.f32 %v442, %v465
    %s467 = sld [smem:[#allocation3 + $0x4a]]
    %s468 = scalar_lea.vmem %s0, 592
    %v469 = vld [vmem:[%s468] sm:$0x7f]
    %v470 = vstv %s467
    %v471 = vmul.f32 %v470, %v469
    %v472 = vadd.f32 %v448, %v471
    %s473 = sld [smem:[#allocation3 + $0x4b]]
    %s474 = scalar_lea.vmem %s0, 600
    %v475 = vld [vmem:[%s474] sm:$0x7f]
    %v476 = vstv %s473
    %v477 = vmul.f32 %v476, %v475
    %v478 = vadd.f32 %v454, %v477
    %s479 = sld [smem:[#allocation3 + $0x4c]]
    %s480 = scalar_lea.vmem %s0, 608
    %v481 = vld [vmem:[%s480] sm:$0x7f]
    %v482 = vstv %s479
    %v483 = vmul.f32 %v482, %v481
    %v484 = vadd.f32 %v460, %v483
    %s485 = sld [smem:[#allocation3 + $0x4d]]
    %s486 = scalar_lea.vmem %s0, 616
    %v487 = vld [vmem:[%s486] sm:$0x7f]
    %v488 = vstv %s485
    %v489 = vmul.f32 %v488, %v487
    %v490 = vadd.f32 %v466, %v489
    %s491 = sld [smem:[#allocation3 + $0x4e]]
    %s492 = scalar_lea.vmem %s0, 624
    %v493 = vld [vmem:[%s492] sm:$0x7f]
    %v494 = vstv %s491
    %v495 = vmul.f32 %v494, %v493
    %v496 = vadd.f32 %v472, %v495
    %s497 = sld [smem:[#allocation3 + $0x4f]]
    %s498 = scalar_lea.vmem %s0, 632
    %v499 = vld [vmem:[%s498] sm:$0x7f]
    %v500 = vstv %s497
    %v501 = vmul.f32 %v500, %v499
    %v502 = vadd.f32 %v478, %v501
    %s503 = sld [smem:[#allocation3 + $0x50]]
    %s504 = scalar_lea.vmem %s0, 640
    %v505 = vld [vmem:[%s504] sm:$0x7f]
    %v506 = vstv %s503
    %v507 = vmul.f32 %v506, %v505
    %v508 = vadd.f32 %v484, %v507
    %s509 = sld [smem:[#allocation3 + $0x51]]
    %s510 = scalar_lea.vmem %s0, 648
    %v511 = vld [vmem:[%s510] sm:$0x7f]
    %v512 = vstv %s509
    %v513 = vmul.f32 %v512, %v511
    %v514 = vadd.f32 %v490, %v513
    %s515 = sld [smem:[#allocation3 + $0x52]]
    %s516 = scalar_lea.vmem %s0, 656
    %v517 = vld [vmem:[%s516] sm:$0x7f]
    %v518 = vstv %s515
    %v519 = vmul.f32 %v518, %v517
    %v520 = vadd.f32 %v496, %v519
    %s521 = sld [smem:[#allocation3 + $0x53]]
    %s522 = scalar_lea.vmem %s0, 664
    %v523 = vld [vmem:[%s522] sm:$0x7f]
    %v524 = vstv %s521
    %v525 = vmul.f32 %v524, %v523
    %v526 = vadd.f32 %v502, %v525
    %s527 = sld [smem:[#allocation3 + $0x54]]
    %s528 = scalar_lea.vmem %s0, 672
    %v529 = vld [vmem:[%s528] sm:$0x7f]
    %v530 = vstv %s527
    %v531 = vmul.f32 %v530, %v529
    %v532 = vadd.f32 %v508, %v531
    %s533 = sld [smem:[#allocation3 + $0x55]]
    %s534 = scalar_lea.vmem %s0, 680
    %v535 = vld [vmem:[%s534] sm:$0x7f]
    %v536 = vstv %s533
    %v537 = vmul.f32 %v536, %v535
    %v538 = vadd.f32 %v514, %v537
    %s539 = sld [smem:[#allocation3 + $0x56]]
    %s540 = scalar_lea.vmem %s0, 688
    %v541 = vld [vmem:[%s540] sm:$0x7f]
    %v542 = vstv %s539
    %v543 = vmul.f32 %v542, %v541
    %v544 = vadd.f32 %v520, %v543
    %s545 = sld [smem:[#allocation3 + $0x57]]
    %s546 = scalar_lea.vmem %s0, 696
    %v547 = vld [vmem:[%s546] sm:$0x7f]
    %v548 = vstv %s545
    %v549 = vmul.f32 %v548, %v547
    %v550 = vadd.f32 %v526, %v549
    %s551 = sld [smem:[#allocation3 + $0x58]]
    %s552 = scalar_lea.vmem %s0, 704
    %v553 = vld [vmem:[%s552] sm:$0x7f]
    %v554 = vstv %s551
    %v555 = vmul.f32 %v554, %v553
    %v556 = vadd.f32 %v532, %v555
    %s557 = sld [smem:[#allocation3 + $0x59]]
    %s558 = scalar_lea.vmem %s0, 712
    %v559 = vld [vmem:[%s558] sm:$0x7f]
    %v560 = vstv %s557
    %v561 = vmul.f32 %v560, %v559
    %v562 = vadd.f32 %v538, %v561
    %s563 = sld [smem:[#allocation3 + $0x5a]]
    %s564 = scalar_lea.vmem %s0, 720
    %v565 = vld [vmem:[%s564] sm:$0x7f]
    %v566 = vstv %s563
    %v567 = vmul.f32 %v566, %v565
    %v568 = vadd.f32 %v544, %v567
    %s569 = sld [smem:[#allocation3 + $0x5b]]
    %s570 = scalar_lea.vmem %s0, 728
    %v571 = vld [vmem:[%s570] sm:$0x7f]
    %v572 = vstv %s569
    %v573 = vmul.f32 %v572, %v571
    %v574 = vadd.f32 %v550, %v573
    %s575 = sld [smem:[#allocation3 + $0x5c]]
    %s576 = scalar_lea.vmem %s0, 736
    %v577 = vld [vmem:[%s576] sm:$0x7f]
    %v578 = vstv %s575
    %v579 = vmul.f32 %v578, %v577
    %v580 = vadd.f32 %v556, %v579
    %s581 = sld [smem:[#allocation3 + $0x5d]]
    %s582 = scalar_lea.vmem %s0, 744
    %v583 = vld [vmem:[%s582] sm:$0x7f]
    %v584 = vstv %s581
    %v585 = vmul.f32 %v584, %v583
    %v586 = vadd.f32 %v562, %v585
    %s587 = sld [smem:[#allocation3 + $0x5e]]
    %s588 = scalar_lea.vmem %s0, 752
    %v589 = vld [vmem:[%s588] sm:$0x7f]
    %v590 = vstv %s587
    %v591 = vmul.f32 %v590, %v589
    %v592 = vadd.f32 %v568, %v591
    %s593 = sld [smem:[#allocation3 + $0x5f]]
    %s594 = scalar_lea.vmem %s0, 760
    %v595 = vld [vmem:[%s594] sm:$0x7f]
    %v596 = vstv %s593
    %v597 = vmul.f32 %v596, %v595
    %v598 = vadd.f32 %v574, %v597
    %s599 = sld [smem:[#allocation3 + $0x60]]
    %s600 = scalar_lea.vmem %s0, 768
    %v601 = vld [vmem:[%s600] sm:$0x7f]
    %v602 = vstv %s599
    %v603 = vmul.f32 %v602, %v601
    %v604 = vadd.f32 %v580, %v603
    %s605 = sld [smem:[#allocation3 + $0x61]]
    %s606 = scalar_lea.vmem %s0, 776
    %v607 = vld [vmem:[%s606] sm:$0x7f]
    %v608 = vstv %s605
    %v609 = vmul.f32 %v608, %v607
    %v610 = vadd.f32 %v586, %v609
    %s611 = sld [smem:[#allocation3 + $0x62]]
    %s612 = scalar_lea.vmem %s0, 784
    %v613 = vld [vmem:[%s612] sm:$0x7f]
    %v614 = vstv %s611
    %v615 = vmul.f32 %v614, %v613
    %v616 = vadd.f32 %v592, %v615
    %s617 = sld [smem:[#allocation3 + $0x63]]
    %s618 = scalar_lea.vmem %s0, 792
    %v619 = vld [vmem:[%s618] sm:$0x7f]
    %v620 = vstv %s617
    %v621 = vmul.f32 %v620, %v619
    %v622 = vadd.f32 %v598, %v621
    %s623 = sld [smem:[#allocation3 + $0x64]]
    %s624 = scalar_lea.vmem %s0, 800
    %v625 = vld [vmem:[%s624] sm:$0x7f]
    %v626 = vstv %s623
    %v627 = vmul.f32 %v626, %v625
    %v628 = vadd.f32 %v604, %v627
    %s629 = sld [smem:[#allocation3 + $0x65]]
    %s630 = scalar_lea.vmem %s0, 808
    %v631 = vld [vmem:[%s630] sm:$0x7f]
    %v632 = vstv %s629
    %v633 = vmul.f32 %v632, %v631
    %v634 = vadd.f32 %v610, %v633
    %s635 = sld [smem:[#allocation3 + $0x66]]
    %s636 = scalar_lea.vmem %s0, 816
    %v637 = vld [vmem:[%s636] sm:$0x7f]
    %v638 = vstv %s635
    %v639 = vmul.f32 %v638, %v637
    %v640 = vadd.f32 %v616, %v639
    %s641 = sld [smem:[#allocation3 + $0x67]]
    %s642 = scalar_lea.vmem %s0, 824
    %v643 = vld [vmem:[%s642] sm:$0x7f]
    %v644 = vstv %s641
    %v645 = vmul.f32 %v644, %v643
    %v646 = vadd.f32 %v622, %v645
    %s647 = sld [smem:[#allocation3 + $0x68]]
    %s648 = scalar_lea.vmem %s0, 832
    %v649 = vld [vmem:[%s648] sm:$0x7f]
    %v650 = vstv %s647
    %v651 = vmul.f32 %v650, %v649
    %v652 = vadd.f32 %v628, %v651
    %s653 = sld [smem:[#allocation3 + $0x69]]
    %s654 = scalar_lea.vmem %s0, 840
    %v655 = vld [vmem:[%s654] sm:$0x7f]
    %v656 = vstv %s653
    %v657 = vmul.f32 %v656, %v655
    %v658 = vadd.f32 %v634, %v657
    %s659 = sld [smem:[#allocation3 + $0x6a]]
    %s660 = scalar_lea.vmem %s0, 848
    %v661 = vld [vmem:[%s660] sm:$0x7f]
    %v662 = vstv %s659
    %v663 = vmul.f32 %v662, %v661
    %v664 = vadd.f32 %v640, %v663
    %s665 = sld [smem:[#allocation3 + $0x6b]]
    %s666 = scalar_lea.vmem %s0, 856
    %v667 = vld [vmem:[%s666] sm:$0x7f]
    %v668 = vstv %s665
    %v669 = vmul.f32 %v668, %v667
    %v670 = vadd.f32 %v646, %v669
    %s671 = sld [smem:[#allocation3 + $0x6c]]
    %s672 = scalar_lea.vmem %s0, 864
    %v673 = vld [vmem:[%s672] sm:$0x7f]
    %v674 = vstv %s671
    %v675 = vmul.f32 %v674, %v673
    %v676 = vadd.f32 %v652, %v675
    %s677 = sld [smem:[#allocation3 + $0x6d]]
    %s678 = scalar_lea.vmem %s0, 872
    %v679 = vld [vmem:[%s678] sm:$0x7f]
    %v680 = vstv %s677
    %v681 = vmul.f32 %v680, %v679
    %v682 = vadd.f32 %v658, %v681
    %s683 = sld [smem:[#allocation3 + $0x6e]]
    %s684 = scalar_lea.vmem %s0, 880
    %v685 = vld [vmem:[%s684] sm:$0x7f]
    %v686 = vstv %s683
    %v687 = vmul.f32 %v686, %v685
    %v688 = vadd.f32 %v664, %v687
    %s689 = sld [smem:[#allocation3 + $0x6f]]
    %s690 = scalar_lea.vmem %s0, 888
    %v691 = vld [vmem:[%s690] sm:$0x7f]
    %v692 = vstv %s689
    %v693 = vmul.f32 %v692, %v691
    %v694 = vadd.f32 %v670, %v693
    %s695 = sld [smem:[#allocation3 + $0x70]]
    %s696 = scalar_lea.vmem %s0, 896
    %v697 = vld [vmem:[%s696] sm:$0x7f]
    %v698 = vstv %s695
    %v699 = vmul.f32 %v698, %v697
    %v700 = vadd.f32 %v676, %v699
    %s701 = sld [smem:[#allocation3 + $0x71]]
    %s702 = scalar_lea.vmem %s0, 904
    %v703 = vld [vmem:[%s702] sm:$0x7f]
    %v704 = vstv %s701
    %v705 = vmul.f32 %v704, %v703
    %v706 = vadd.f32 %v682, %v705
    %s707 = sld [smem:[#allocation3 + $0x72]]
    %s708 = scalar_lea.vmem %s0, 912
    %v709 = vld [vmem:[%s708] sm:$0x7f]
    %v710 = vstv %s707
    %v711 = vmul.f32 %v710, %v709
    %v712 = vadd.f32 %v688, %v711
    %s713 = sld [smem:[#allocation3 + $0x73]]
    %s714 = scalar_lea.vmem %s0, 920
    %v715 = vld [vmem:[%s714] sm:$0x7f]
    %v716 = vstv %s713
    %v717 = vmul.f32 %v716, %v715
    %v718 = vadd.f32 %v694, %v717
    %s719 = sld [smem:[#allocation3 + $0x74]]
    %s720 = scalar_lea.vmem %s0, 928
    %v721 = vld [vmem:[%s720] sm:$0x7f]
    %v722 = vstv %s719
    %v723 = vmul.f32 %v722, %v721
    %v724 = vadd.f32 %v700, %v723
    %s725 = sld [smem:[#allocation3 + $0x75]]
    %s726 = scalar_lea.vmem %s0, 936
    %v727 = vld [vmem:[%s726] sm:$0x7f]
    %v728 = vstv %s725
    %v729 = vmul.f32 %v728, %v727
    %v730 = vadd.f32 %v706, %v729
    %s731 = sld [smem:[#allocation3 + $0x76]]
    %s732 = scalar_lea.vmem %s0, 944
    %v733 = vld [vmem:[%s732] sm:$0x7f]
    %v734 = vstv %s731
    %v735 = vmul.f32 %v734, %v733
    %v736 = vadd.f32 %v712, %v735
    %s737 = sld [smem:[#allocation3 + $0x77]]
    %s738 = scalar_lea.vmem %s0, 952
    %v739 = vld [vmem:[%s738] sm:$0x7f]
    %v740 = vstv %s737
    %v741 = vmul.f32 %v740, %v739
    %v742 = vadd.f32 %v718, %v741
    %s743 = sld [smem:[#allocation3 + $0x78]]
    %s744 = scalar_lea.vmem %s0, 960
    %v745 = vld [vmem:[%s744] sm:$0x7f]
    %v746 = vstv %s743
    %v747 = vmul.f32 %v746, %v745
    %v748 = vadd.f32 %v724, %v747
    %s749 = sld [smem:[#allocation3 + $0x79]]
    %s750 = scalar_lea.vmem %s0, 968
    %v751 = vld [vmem:[%s750] sm:$0x7f]
    %v752 = vstv %s749
    %v753 = vmul.f32 %v752, %v751
    %v754 = vadd.f32 %v730, %v753
    %s755 = sld [smem:[#allocation3 + $0x7a]]
    %s756 = scalar_lea.vmem %s0, 976
    %v757 = vld [vmem:[%s756] sm:$0x7f]
    %v758 = vstv %s755
    %v759 = vmul.f32 %v758, %v757
    %v760 = vadd.f32 %v736, %v759
    %s761 = sld [smem:[#allocation3 + $0x7b]]
    %s762 = scalar_lea.vmem %s0, 984
    %v763 = vld [vmem:[%s762] sm:$0x7f]
    %v764 = vstv %s761
    %v765 = vmul.f32 %v764, %v763
    %v766 = vadd.f32 %v742, %v765
    %s767 = sld [smem:[#allocation3 + $0x7c]]
    %s768 = scalar_lea.vmem %s0, 992
    %v769 = vld [vmem:[%s768] sm:$0x7f]
    %v770 = vstv %s767
    %v771 = vmul.f32 %v770, %v769
    %v772 = vadd.f32 %v748, %v771
    %s773 = sld [smem:[#allocation3 + $0x7d]]
    %s774 = scalar_lea.vmem %s0, 1000
    %v775 = vld [vmem:[%s774] sm:$0x7f]
    %v776 = vstv %s773
    %v777 = vmul.f32 %v776, %v775
    %v778 = vadd.f32 %v754, %v777
    %s779 = sld [smem:[#allocation3 + $0x7e]]
    %s780 = scalar_lea.vmem %s0, 1008
    %v781 = vld [vmem:[%s780] sm:$0x7f]
    %v782 = vstv %s779
    %v783 = vmul.f32 %v782, %v781
    %v784 = vadd.f32 %v760, %v783
    %s785 = sld [smem:[#allocation3 + $0x7f]]
    %s786 = scalar_lea.vmem %s0, 1016
    %v787 = vld [vmem:[%s786] sm:$0x7f]
    %v788 = vstv %s785
    %v789 = vmul.f32 %v788, %v787
    %v790 = vadd.f32 %v766, %v789
    %s791 = sld [smem:[#allocation3 + $0x80]]
    %s792 = scalar_lea.vmem %s0, 1024
    %v793 = vld [vmem:[%s792] sm:$0x7f]
    %v794 = vstv %s791
    %v795 = vmul.f32 %v794, %v793
    %v796 = vadd.f32 %v772, %v795
    %s797 = sld [smem:[#allocation3 + $0x81]]
    %s798 = scalar_lea.vmem %s0, 1032
    %v799 = vld [vmem:[%s798] sm:$0x7f]
    %v800 = vstv %s797
    %v801 = vmul.f32 %v800, %v799
    %v802 = vadd.f32 %v778, %v801
    %s803 = sld [smem:[#allocation3 + $0x82]]
    %s804 = scalar_lea.vmem %s0, 1040
    %v805 = vld [vmem:[%s804] sm:$0x7f]
    %v806 = vstv %s803
    %v807 = vmul.f32 %v806, %v805
    %v808 = vadd.f32 %v784, %v807
    %s809 = sld [smem:[#allocation3 + $0x83]]
    %s810 = scalar_lea.vmem %s0, 1048
    %v811 = vld [vmem:[%s810] sm:$0x7f]
    %v812 = vstv %s809
    %v813 = vmul.f32 %v812, %v811
    %v814 = vadd.f32 %v790, %v813
    %s815 = sld [smem:[#allocation3 + $0x84]]
    %s816 = scalar_lea.vmem %s0, 1056
    %v817 = vld [vmem:[%s816] sm:$0x7f]
    %v818 = vstv %s815
    %v819 = vmul.f32 %v818, %v817
    %v820 = vadd.f32 %v796, %v819
    %s821 = sld [smem:[#allocation3 + $0x85]]
    %s822 = scalar_lea.vmem %s0, 1064
    %v823 = vld [vmem:[%s822] sm:$0x7f]
    %v824 = vstv %s821
    %v825 = vmul.f32 %v824, %v823
    %v826 = vadd.f32 %v802, %v825
    %s827 = sld [smem:[#allocation3 + $0x86]]
    %s828 = scalar_lea.vmem %s0, 1072
    %v829 = vld [vmem:[%s828] sm:$0x7f]
    %v830 = vstv %s827
    %v831 = vmul.f32 %v830, %v829
    %v832 = vadd.f32 %v808, %v831
    %s833 = sld [smem:[#allocation3 + $0x87]]
    %s834 = scalar_lea.vmem %s0, 1080
    %v835 = vld [vmem:[%s834] sm:$0x7f]
    %v836 = vstv %s833
    %v837 = vmul.f32 %v836, %v835
    %v838 = vadd.f32 %v814, %v837
    %s839 = sld [smem:[#allocation3 + $0x88]]
    %s840 = scalar_lea.vmem %s0, 1088
    %v841 = vld [vmem:[%s840] sm:$0x7f]
    %v842 = vstv %s839
    %v843 = vmul.f32 %v842, %v841
    %v844 = vadd.f32 %v820, %v843
    %s845 = sld [smem:[#allocation3 + $0x89]]
    %s846 = scalar_lea.vmem %s0, 1096
    %v847 = vld [vmem:[%s846] sm:$0x7f]
    %v848 = vstv %s845
    %v849 = vmul.f32 %v848, %v847
    %v850 = vadd.f32 %v826, %v849
    %s851 = sld [smem:[#allocation3 + $0x8a]]
    %s852 = scalar_lea.vmem %s0, 1104
    %v853 = vld [vmem:[%s852] sm:$0x7f]
    %v854 = vstv %s851
    %v855 = vmul.f32 %v854, %v853
    %v856 = vadd.f32 %v832, %v855
    %s857 = sld [smem:[#allocation3 + $0x8b]]
    %s858 = scalar_lea.vmem %s0, 1112
    %v859 = vld [vmem:[%s858] sm:$0x7f]
    %v860 = vstv %s857
    %v861 = vmul.f32 %v860, %v859
    %v862 = vadd.f32 %v838, %v861
    %s863 = sld [smem:[#allocation3 + $0x8c]]
    %s864 = scalar_lea.vmem %s0, 1120
    %v865 = vld [vmem:[%s864] sm:$0x7f]
    %v866 = vstv %s863
    %v867 = vmul.f32 %v866, %v865
    %v868 = vadd.f32 %v844, %v867
    %s869 = sld [smem:[#allocation3 + $0x8d]]
    %s870 = scalar_lea.vmem %s0, 1128
    %v871 = vld [vmem:[%s870] sm:$0x7f]
    %v872 = vstv %s869
    %v873 = vmul.f32 %v872, %v871
    %v874 = vadd.f32 %v850, %v873
    %s875 = sld [smem:[#allocation3 + $0x8e]]
    %s876 = scalar_lea.vmem %s0, 1136
    %v877 = vld [vmem:[%s876] sm:$0x7f]
    %v878 = vstv %s875
    %v879 = vmul.f32 %v878, %v877
    %v880 = vadd.f32 %v856, %v879
    %s881 = sld [smem:[#allocation3 + $0x8f]]
    %s882 = scalar_lea.vmem %s0, 1144
    %v883 = vld [vmem:[%s882] sm:$0x7f]
    %v884 = vstv %s881
    %v885 = vmul.f32 %v884, %v883
    %v886 = vadd.f32 %v862, %v885
    %s887 = sld [smem:[#allocation3 + $0x90]]
    %s888 = scalar_lea.vmem %s0, 1152
    %v889 = vld [vmem:[%s888] sm:$0x7f]
    %v890 = vstv %s887
    %v891 = vmul.f32 %v890, %v889
    %v892 = vadd.f32 %v868, %v891
    %s893 = sld [smem:[#allocation3 + $0x91]]
    %s894 = scalar_lea.vmem %s0, 1160
    %v895 = vld [vmem:[%s894] sm:$0x7f]
    %v896 = vstv %s893
    %v897 = vmul.f32 %v896, %v895
    %v898 = vadd.f32 %v874, %v897
    %s899 = sld [smem:[#allocation3 + $0x92]]
    %s900 = scalar_lea.vmem %s0, 1168
    %v901 = vld [vmem:[%s900] sm:$0x7f]
    %v902 = vstv %s899
    %v903 = vmul.f32 %v902, %v901
    %v904 = vadd.f32 %v880, %v903
    %s905 = sld [smem:[#allocation3 + $0x93]]
    %s906 = scalar_lea.vmem %s0, 1176
    %v907 = vld [vmem:[%s906] sm:$0x7f]
    %v908 = vstv %s905
    %v909 = vmul.f32 %v908, %v907
    %v910 = vadd.f32 %v886, %v909
    %s911 = sld [smem:[#allocation3 + $0x94]]
    %s912 = scalar_lea.vmem %s0, 1184
    %v913 = vld [vmem:[%s912] sm:$0x7f]
    %v914 = vstv %s911
    %v915 = vmul.f32 %v914, %v913
    %v916 = vadd.f32 %v892, %v915
    %s917 = sld [smem:[#allocation3 + $0x95]]
    %s918 = scalar_lea.vmem %s0, 1192
    %v919 = vld [vmem:[%s918] sm:$0x7f]
    %v920 = vstv %s917
    %v921 = vmul.f32 %v920, %v919
    %v922 = vadd.f32 %v898, %v921
    %v923 = vadd.f32 %v916, %v922
    %v924 = vadd.f32 %v923, %v904
    %v925 = vadd.f32 %v924, %v910
    %s926 = sld [smem:[#allocation2]]
    %v927 = vstv %s926
    %v928 = vadd.f32 %v925, %v927
    %vm929 = vcmp.gt.f32.partialorder %v928, 0.0
    %v930 = vmul.f32 %v928, 0.6197335
    %v931 = vsel %vm929, %v928, %v930
    %vm932 = vcmask 47104
    %933 = vst.msk [vmem:[%s3] sm:$0x7f] %vm932, %v931
    // Predicated region
    $region18: #{tpu_custom_call.1} parent=1 // pred_check
      _
    $region19: #{tpu_custom_call.1} parent=1 // pred_check_branch
      %935 = sbr.rel (0) target = $region21
    $region20: #{tpu_custom_call.1} parent=1 // pred_region
      _
    $region21: #{tpu_custom_call.1} parent=1 // pred_fallthru
      _
    // Predicated region
    $region22: #{tpu_custom_call.1} parent=1 // pred_check
      _
    $region23: #{tpu_custom_call.1} parent=1 // pred_check_branch
      %937 = sbr.rel (0) target = $region25
    $region24: #{tpu_custom_call.1} parent=1 // pred_region
      _
    $region25: #{tpu_custom_call.1} parent=1 // pred_fallthru
      _
    %938 = vsyncpa [#allocation4], 1

</llo_original>
